<compile_context>
chip_gen: v6e
topology: v6e:2x2x1
jax: 0.10.0
libtpu: 0.0.40
codegen_flags: <defaults>
</compile_context>

<pallas_src>
from functools import partial

import jax
import jax.numpy as jnp
from jax import lax
from jax.experimental import pallas as pl
from jax.experimental.pallas import tpu as pltpu


def _center_intersection_kernel(emb_ref, w1_ref, b1_ref, w2_ref, b2_ref,
                                out_ref, *, matmul_dtype):
    bt, n, d = emb_ref.shape
    emb = emb_ref[...]                                   # (bt, N, D) f32

    # Fold (batch_tile, N) into the MXU M dimension: one big matmul per layer.
    # For N a multiple of 8 this is a pure re-view (no sublane relayout).
    x = emb.reshape(bt * n, d)
    w1 = w1_ref[...]
    w2 = w2_ref[...]
    if matmul_dtype != jnp.float32:
        x = x.astype(matmul_dtype)
        w1 = w1.astype(matmul_dtype)
        w2 = w2.astype(matmul_dtype)

    # layer1: x @ W1.T + b1.  Contracting dim 1 of both operands consumes the
    # PyTorch-layout (D_out, D_in) weights directly (no wrapper transpose).
    h = lax.dot_general(x, w1, dimension_numbers=(((1,), (1,)), ((), ())),
                        preferred_element_type=jnp.float32)
    h = jnp.maximum(h + b1_ref[...], 0.0)                # ReLU, f32 on the VPU

    # layer2: h @ W2.T + b2
    logits = lax.dot_general(h.astype(matmul_dtype), w2,
                             dimension_numbers=(((1,), (1,)), ((), ())),
                             preferred_element_type=jnp.float32)
    logits = (logits + b2_ref[...]).reshape(bt, n, d)

    # Numerically stable softmax over N, fused with the weighted sum:
    #   out = (sum_n e_n * emb_n) / (sum_n e_n)
    # Normalization collapses to one multiply per (bt, D) output element.
    m = jnp.max(logits, axis=1, keepdims=True)           # (bt, 1, D)
    e = jnp.exp(logits - m)                              # (bt, N, D), EUP
    denom = jnp.sum(e, axis=1)                           # (bt, D)
    weighted = jnp.sum(e * emb, axis=1)                  # (bt, D)
    out_ref[...] = (weighted *
                    pl.reciprocal(denom, approx=True)).astype(out_ref.dtype)


def _choose_block_b(B, N, D, requested, vmem_block_budget=4 << 20):
    """Pick the batch tile: as large as the VMEM budget allows (fewer grid
    steps -> less per-step pipeline overhead), capped at 512 and at B."""
    if requested is not None:
        return max(1, min(requested, B))
    bytes_per_problem = max(1, N * D * 4)                # f32 emb block dominates
    bb = vmem_block_budget // bytes_per_problem
    return int(max(1, min(bb, 512, B)))


def center_intersection(embeddings, w1, b1, w2, b2, *, block_b=None,
                        matmul_dtype=jnp.float32):
    """Batched CenterIntersection forward.

    embeddings: (N, D) for a single problem (original module signature), or
                (B, N, D) for B independent problems.
    w1: (H, D), b1: (H,), w2: (D, H), b2: (D,)  -- PyTorch nn.Linear layout.
    Returns float32 (D,) or (B, D).
    """
    squeeze = embeddings.ndim == 2
    if squeeze:
        embeddings = embeddings[None]
    B, N, D = embeddings.shape
    H, D_in = w1.shape
    assert D_in == D, (w1.shape, D)
    assert w2.shape == (D, H), (w2.shape, (D, H))
    assert b1.shape == (H,) and b2.shape == (D,), (b1.shape, b2.shape)

    embeddings = embeddings.astype(jnp.float32)
    block_b = _choose_block_b(B, N, D, block_b)
    n_blocks = pl.cdiv(B, block_b)
    b_pad = n_blocks * block_b
    if b_pad != B:
        embeddings = jnp.pad(embeddings, ((0, b_pad - B), (0, 0), (0, 0)))

    kernel = partial(_center_intersection_kernel, matmul_dtype=matmul_dtype)
    out = pl.pallas_call(
        kernel,
        out_shape=jax.ShapeDtypeStruct((b_pad, D), jnp.float32),
        grid=(n_blocks,),
        in_specs=[
            pl.BlockSpec((block_b, N, D), lambda b: (b, 0, 0)),
            pl.BlockSpec((H, D), lambda b: (0, 0)),   # weights/biases shared
            pl.BlockSpec((1, H), lambda b: (0, 0)),   # across all grid steps
            pl.BlockSpec((D, H), lambda b: (0, 0)),
            pl.BlockSpec((1, D), lambda b: (0, 0)),
        ],
        out_specs=pl.BlockSpec((block_b, D), lambda b: (b, 0)),
        compiler_params=pltpu.CompilerParams(
            dimension_semantics=("parallel",)),
    )(embeddings, w1.astype(jnp.float32),
      b1.reshape(1, H).astype(jnp.float32),
      w2.astype(jnp.float32),
      b2.reshape(1, D).astype(jnp.float32))

    out = out[:B]
    return out[0] if squeeze else out


def xavier_uniform(key, shape, dtype=jnp.float32):
    fan_out, fan_in = shape
    limit = jnp.sqrt(6.0 / (fan_in + fan_out))
    return jax.random.uniform(key, shape, dtype, minval=-limit, maxval=limit)


def linear_bias_init(key, fan_in, dim, dtype=jnp.float32):
    bound = 1.0 / jnp.sqrt(fan_in)
    return jax.random.uniform(key, (dim,), dtype, minval=-bound, maxval=bound)


def reference(embeddings, w1, b1, w2, b2):
    h = jax.nn.relu(embeddings @ w1.T + b1)
    att = jax.nn.softmax(h @ w2.T + b2, axis=0)
    return jnp.sum(att * embeddings, axis=0)


if __name__ == "__main__":
    dim = 32      # module's `dim` (hidden size D)
    n = 8         # number of conjunct embeddings per intersection
    batch = 100   # independent intersection problems batched per call
                  # (deliberately not a multiple of block_b to exercise padding)

    key = jax.random.PRNGKey(0)
    k_emb, k_w1, k_b1, k_w2, k_b2 = jax.random.split(key, 5)

    embeddings = jax.random.normal(k_emb, (batch, n, dim), dtype=jnp.float32)
    w1 = xavier_uniform(k_w1, (dim, dim))
    b1 = linear_bias_init(k_b1, dim, dim)
    w2 = xavier_uniform(k_w2, (dim, dim))
    b2 = linear_bias_init(k_b2, dim, dim)

    ref = jax.vmap(lambda e: reference(e, w1, b1, w2, b2))(embeddings)

    # f32 MXU path, explicit small tile to exercise the padded multi-step grid.
    out = center_intersection(embeddings, w1, b1, w2, b2, block_b=32)
    out = jax.block_until_ready(out)
    assert out.shape == (batch, dim)
    err = float(jnp.max(jnp.abs(out - ref)))
    assert err < 5e-3, err

    # Auto-sized tile + bf16 MXU operands (recommended on v6e/v7x);
    # f32 accumulation / softmax / weighted sum.
    out_bf16 = center_intersection(embeddings, w1, b1, w2, b2,
                                   matmul_dtype=jnp.bfloat16)
    out_bf16 = jax.block_until_ready(out_bf16)
    assert float(jnp.max(jnp.abs(out_bf16 - ref))) < 0.1

    # Single-problem (N, D) path, matching the original module's forward.
    single = center_intersection(embeddings[0], w1, b1, w2, b2)
    single = jax.block_until_ready(single)
    assert single.shape == (dim,)
    assert float(jnp.max(jnp.abs(single - ref[0]))) < 5e-3

    print("KERNEL_OK")
</pallas_src>

<mosaic_0001>
module attributes {stable_mosaic.version = 11 : i64} {
  func.func @_center_intersection_kernel(%arg0: i32, %arg1: memref<32x8x32xf32, #tpu.memory_space<vmem>>, %arg2: memref<32x32xf32, #tpu.memory_space<vmem>>, %arg3: memref<1x32xf32, #tpu.memory_space<vmem>>, %arg4: memref<32x32xf32, #tpu.memory_space<vmem>>, %arg5: memref<1x32xf32, #tpu.memory_space<vmem>>, %arg6: memref<32x32xf32, #tpu.memory_space<vmem>>) attributes {dimension_semantics = [#tpu.dimension_semantics<parallel>], iteration_bounds = array<i64: 4>, scalar_prefetch = 0 : i64, scratch_operands = 0 : i64, tpu.core_type = #tpu.core_type<tc>, window_params = [{transform_indices = @transform_0, window_bounds = array<i64: 32, 8, 32>}, {pipeline_mode = #tpu.pipeline_mode<synchronous>, transform_indices = @transform_1, window_bounds = array<i64: 32, 32>}, {pipeline_mode = #tpu.pipeline_mode<synchronous>, transform_indices = @transform_2, window_bounds = array<i64: 1, 32>}, {pipeline_mode = #tpu.pipeline_mode<synchronous>, transform_indices = @transform_3, window_bounds = array<i64: 32, 32>}, {pipeline_mode = #tpu.pipeline_mode<synchronous>, transform_indices = @transform_4, window_bounds = array<i64: 1, 32>}, {transform_indices = @transform_5, window_bounds = array<i64: 32, 32>}]} {
    %c0 = arith.constant 0 : index
    %c0_0 = arith.constant 0 : index
    %c0_1 = arith.constant 0 : index
    %0 = vector.load %arg1[%c0, %c0_0, %c0_1] : memref<32x8x32xf32, #tpu.memory_space<vmem>>, vector<32x8x32xf32>
    %1 = vector.shape_cast %0 : vector<32x8x32xf32> to vector<256x32xf32>
    %c0_2 = arith.constant 0 : index
    %c0_3 = arith.constant 0 : index
    %2 = vector.load %arg2[%c0_2, %c0_3] : memref<32x32xf32, #tpu.memory_space<vmem>>, vector<32x32xf32>
    %c0_4 = arith.constant 0 : index
    %c0_5 = arith.constant 0 : index
    %3 = vector.load %arg4[%c0_4, %c0_5] : memref<32x32xf32, #tpu.memory_space<vmem>>, vector<32x32xf32>
    %cst = arith.constant dense<0.000000e+00> : vector<256x32xf32>
    %4 = tpu.matmul %1, %2, %cst {dimension_numbers = #tpu.dot_dimension_numbers<[1], [1], [0], [0], [0, 0, 1, 0], [], []>} : vector<256x32xf32>, vector<32x32xf32>, vector<256x32xf32> -> vector<256x32xf32>
    %c0_6 = arith.constant 0 : index
    %c0_7 = arith.constant 0 : index
    %5 = vector.load %arg3[%c0_6, %c0_7] : memref<1x32xf32, #tpu.memory_space<vmem>>, vector<1x32xf32>
    %6 = vector.broadcast %5 : vector<1x32xf32> to vector<256x32xf32>
    %7 = arith.addf %4, %6 : vector<256x32xf32>
    %cst_8 = arith.constant 0.000000e+00 : f32
    %8 = vector.broadcast %cst_8 : f32 to vector<256x32xf32>
    %9 = arith.maximumf %7, %8 : vector<256x32xf32>
    %cst_9 = arith.constant dense<0.000000e+00> : vector<256x32xf32>
    %10 = tpu.matmul %9, %3, %cst_9 {dimension_numbers = #tpu.dot_dimension_numbers<[1], [1], [0], [0], [0, 0, 1, 0], [], []>} : vector<256x32xf32>, vector<32x32xf32>, vector<256x32xf32> -> vector<256x32xf32>
    %c0_10 = arith.constant 0 : index
    %c0_11 = arith.constant 0 : index
    %11 = vector.load %arg5[%c0_10, %c0_11] : memref<1x32xf32, #tpu.memory_space<vmem>>, vector<1x32xf32>
    %12 = vector.broadcast %11 : vector<1x32xf32> to vector<256x32xf32>
    %13 = arith.addf %10, %12 : vector<256x32xf32>
    %14 = vector.shape_cast %13 : vector<256x32xf32> to vector<32x8x32xf32>
    %cst_12 = arith.constant dense<0xFF800000> : vector<32x32xf32>
    %15 = vector.multi_reduction <maximumf>, %14, %cst_12 [1] : vector<32x8x32xf32> to vector<32x32xf32>
    %16 = vector.shape_cast %15 : vector<32x32xf32> to vector<32x1x32xf32>
    %17 = vector.broadcast %16 : vector<32x1x32xf32> to vector<32x8x32xf32>
    %18 = arith.subf %14, %17 : vector<32x8x32xf32>
    %19 = math.exp %18 : vector<32x8x32xf32>
    %cst_13 = arith.constant dense<0.000000e+00> : vector<32x32xf32>
    %20 = vector.multi_reduction <add>, %19, %cst_13 [1] : vector<32x8x32xf32> to vector<32x32xf32>
    %21 = arith.mulf %19, %0 : vector<32x8x32xf32>
    %cst_14 = arith.constant dense<0.000000e+00> : vector<32x32xf32>
    %22 = vector.multi_reduction <add>, %21, %cst_14 [1] : vector<32x8x32xf32> to vector<32x32xf32>
    %23 = tpu.reciprocal %20 {approx = true} : vector<32x32xf32> -> vector<32x32xf32>
    %24 = arith.mulf %22, %23 : vector<32x32xf32>
    %c0_15 = arith.constant 0 : index
    %c0_16 = arith.constant 0 : index
    %25 = vector.load %arg6[%c0_15, %c0_16] : memref<32x32xf32, #tpu.memory_space<vmem>>, vector<32x32xf32>
    tpu.vector_store %arg6[%c0_15, %c0_16], %24 {strides = array<i32>} : memref<32x32xf32, #tpu.memory_space<vmem>>, vector<32x32xf32>,
    return
  }
  func.func @transform_0(%arg0: i32) -> (i32, i32, i32) {
    %c0_i32 = arith.constant 0 : i32
    %c0_i32_0 = arith.constant 0 : i32
    %c0_i32_1 = arith.constant 0 : i32
    return %arg0, %c0_i32, %c0_i32_0 : i32, i32, i32
  }
  func.func @transform_1(%arg0: i32) -> (i32, i32) {
    %c0_i32 = arith.constant 0 : i32
    %c0_i32_0 = arith.constant 0 : i32
    %c0_i32_1 = arith.constant 0 : i32
    return %c0_i32, %c0_i32_0 : i32, i32
  }
  func.func @transform_2(%arg0: i32) -> (i32, i32) {
    %c0_i32 = arith.constant 0 : i32
    %c0_i32_0 = arith.constant 0 : i32
    %c0_i32_1 = arith.constant 0 : i32
    return %c0_i32, %c0_i32_0 : i32, i32
  }
  func.func @transform_3(%arg0: i32) -> (i32, i32) {
    %c0_i32 = arith.constant 0 : i32
    %c0_i32_0 = arith.constant 0 : i32
    %c0_i32_1 = arith.constant 0 : i32
    return %c0_i32, %c0_i32_0 : i32, i32
  }
  func.func @transform_4(%arg0: i32) -> (i32, i32) {
    %c0_i32 = arith.constant 0 : i32
    %c0_i32_0 = arith.constant 0 : i32
    %c0_i32_1 = arith.constant 0 : i32
    return %c0_i32, %c0_i32_0 : i32, i32
  }
  func.func @transform_5(%arg0: i32) -> (i32, i32) {
    %c0_i32 = arith.constant 0 : i32
    %c0_i32_0 = arith.constant 0 : i32
    return %arg0, %c0_i32 : i32, i32
  }
}

</mosaic_0001>

<llo_original>
// kernel: tpu_custom_call.1
$region0: #{tpu_custom_call.1}
  #allocation0 [shape = 'u32[]', space=smem, size = 0x4, offset = 0x4, fixed_abs, tag = 'smem constant byte address 0x4 - core index']
  #allocation1 [shape = 'u32[144,128]{1,0:T(1,128)}', space=vmem, size = 0x12000, scoped, tag = 'internal scratch']
  %s0 = inlined_call_operand.vmem [shape: f32[128,8,32], index: 0, kind: input, shape index: {}]
  %s1 = inlined_call_operand.vmem [shape: f32[32,32], index: 1, kind: input, shape index: {}]
  %s2 = inlined_call_operand.vmem [shape: f32[1,32], index: 2, kind: input, shape index: {}]
  %s3 = inlined_call_operand.vmem [shape: f32[32,32], index: 3, kind: input, shape index: {}]
  %s4 = inlined_call_operand.vmem [shape: f32[1,32], index: 4, kind: input, shape index: {}]
  %s5 = inlined_call_operand.vmem [shape: f32[128,32], index: 5, kind: output, shape index: {}]
  %s6 = sld [smem:[#allocation0]]
  $region53: #{tpu_custom_call.1} parent=0
    _
  %s8 = ssub.s32 1, %s6
  %s9 = scalar_select 0, %s8, %s6
  loop: start=0, step=1, limit=6
  $region2: #{tpu_custom_call.1} parent=0 // loop_pre_header
    _
  $region3: #{tpu_custom_call.1} parent=0 // loop_header
    %s11 = sphi 0, %s15
    %p12 = scmp.ge.s32.totalorder %s11, 6
    %s21 = sphi 0, %s23
    %s24 = sphi 0, %s21
    %s25 = sphi 0, %s24
    %s41 = sphi 0, %s25
    %s45 = sphi 0, %s45
    %s47 = sphi 0, %s45
    %s48 = sphi 0, %s47
    %s62 = sphi 0, %s48
    %s66 = sphi 0, %s66
    %s68 = sphi 0, %s66
    %s69 = sphi 0, %s68
    %s83 = sphi 0, %s69
    %s87 = sphi 0, %s87
    %s89 = sphi 0, %s87
    %s90 = sphi 0, %s89
    %s104 = sphi 0, %s90
    %s108 = sphi 0, %s108
    %s110 = sphi 0, %s108
    %s111 = sphi 0, %s110
    %s125 = sphi 0, %s111
    %s131 = sphi 0, %s133
    %s134 = sphi 0, %s131
    %s135 = sphi 0, %s134
    %s151 = sphi 0, %s135
  $region4: #{tpu_custom_call.1} parent=0 // loop_header_branch
    %14 = sbr.rel (%p12) target = $region8
  $region5: #{tpu_custom_call.1} parent=0 // loop_body
    %s16 = ssub.s32 %s11, 1
    %s17 = ssub.s32 %s11, 2
    %s18 = sadd.s32 %s11, 1
    %s19 = ssub.s32 %s11, %s18
    %p20 = scmp.eq.s32.totalorder %s19, 0
    %s22 = sadd.s32 %s21, 1
    %s23 = scalar_select %p20, %s21, %s22
    %p26 = pneg %p20
    %p27 = scmp.eq.s32.totalorder %s11, 3
    %p28 = por %p26, %p27
    %p29 = scmp.ne.s32.totalorder %s21, %s24
    %p30 = scmp.eq.s32.totalorder %s11, 0
    %p31 = por %p29, %p30
    %p32 = scmp.ne.s32.totalorder %s21, %s24
    %p33 = scmp.eq.s32.totalorder %s16, 3
    %p34 = por %p32, %p33
    %p35 = scmp.ne.s32.totalorder %s24, %s25
    %p36 = scmp.eq.s32.totalorder %s16, 0
    %p37 = por %p35, %p36
    %p38 = scmp.ne.s32.totalorder %s24, %s25
    %p39 = scmp.eq.s32.totalorder %s17, 3
    %p40 = por %p38, %p39
    %p42 = scmp.ne.s32.totalorder %s25, %s41
    %p43 = scmp.eq.s32.totalorder %s17, 0
    %p44 = por %p42, %p43
    %s46 = sadd.s32 %s45, 1
    %p49 = scmp.eq.s32.totalorder %s11, 3
    %p50 = scmp.ne.s32.totalorder %s45, %s47
    %p51 = scmp.eq.s32.totalorder %s11, 0
    %p52 = por %p50, %p51
    %p53 = scmp.ne.s32.totalorder %s45, %s47
    %p54 = scmp.eq.s32.totalorder %s16, 3
    %p55 = por %p53, %p54
    %p56 = scmp.ne.s32.totalorder %s47, %s48
    %p57 = scmp.eq.s32.totalorder %s16, 0
    %p58 = por %p56, %p57
    %p59 = scmp.ne.s32.totalorder %s47, %s48
    %p60 = scmp.eq.s32.totalorder %s17, 3
    %p61 = por %p59, %p60
    %p63 = scmp.ne.s32.totalorder %s48, %s62
    %p64 = scmp.eq.s32.totalorder %s17, 0
    %p65 = por %p63, %p64
    %s67 = sadd.s32 %s66, 1
    %p70 = scmp.eq.s32.totalorder %s11, 3
    %p71 = scmp.ne.s32.totalorder %s66, %s68
    %p72 = scmp.eq.s32.totalorder %s11, 0
    %p73 = por %p71, %p72
    %p74 = scmp.ne.s32.totalorder %s66, %s68
    %p75 = scmp.eq.s32.totalorder %s16, 3
    %p76 = por %p74, %p75
    %p77 = scmp.ne.s32.totalorder %s68, %s69
    %p78 = scmp.eq.s32.totalorder %s16, 0
    %p79 = por %p77, %p78
    %p80 = scmp.ne.s32.totalorder %s68, %s69
    %p81 = scmp.eq.s32.totalorder %s17, 3
    %p82 = por %p80, %p81
    %p84 = scmp.ne.s32.totalorder %s69, %s83
    %p85 = scmp.eq.s32.totalorder %s17, 0
    %p86 = por %p84, %p85
    %s88 = sadd.s32 %s87, 1
    %p91 = scmp.eq.s32.totalorder %s11, 3
    %p92 = scmp.ne.s32.totalorder %s87, %s89
    %p93 = scmp.eq.s32.totalorder %s11, 0
    %p94 = por %p92, %p93
    %p95 = scmp.ne.s32.totalorder %s87, %s89
    %p96 = scmp.eq.s32.totalorder %s16, 3
    %p97 = por %p95, %p96
    %p98 = scmp.ne.s32.totalorder %s89, %s90
    %p99 = scmp.eq.s32.totalorder %s16, 0
    %p100 = por %p98, %p99
    %p101 = scmp.ne.s32.totalorder %s89, %s90
    %p102 = scmp.eq.s32.totalorder %s17, 3
    %p103 = por %p101, %p102
    %p105 = scmp.ne.s32.totalorder %s90, %s104
    %p106 = scmp.eq.s32.totalorder %s17, 0
    %p107 = por %p105, %p106
    %s109 = sadd.s32 %s108, 1
    %p112 = scmp.eq.s32.totalorder %s11, 3
    %p113 = scmp.ne.s32.totalorder %s108, %s110
    %p114 = scmp.eq.s32.totalorder %s11, 0
    %p115 = por %p113, %p114
    %p116 = scmp.ne.s32.totalorder %s108, %s110
    %p117 = scmp.eq.s32.totalorder %s16, 3
    %p118 = por %p116, %p117
    %p119 = scmp.ne.s32.totalorder %s110, %s111
    %p120 = scmp.eq.s32.totalorder %s16, 0
    %p121 = por %p119, %p120
    %p122 = scmp.ne.s32.totalorder %s110, %s111
    %p123 = scmp.eq.s32.totalorder %s17, 3
    %p124 = por %p122, %p123
    %p126 = scmp.ne.s32.totalorder %s111, %s125
    %p127 = scmp.eq.s32.totalorder %s17, 0
    %p128 = por %p126, %p127
    %s129 = ssub.s32 %s11, %s18
    %p130 = scmp.eq.s32.totalorder %s129, 0
    %s132 = sadd.s32 %s131, 1
    %s133 = scalar_select %p130, %s131, %s132
    %p136 = pneg %p130
    %p137 = scmp.eq.s32.totalorder %s11, 3
    %p138 = por %p136, %p137
    %p139 = scmp.ne.s32.totalorder %s131, %s134
    %p140 = scmp.eq.s32.totalorder %s11, 0
    %p141 = por %p139, %p140
    %p142 = scmp.ne.s32.totalorder %s131, %s134
    %p143 = scmp.eq.s32.totalorder %s16, 3
    %p144 = por %p142, %p143
    %p145 = scmp.ne.s32.totalorder %s134, %s135
    %p146 = scmp.eq.s32.totalorder %s16, 0
    %p147 = por %p145, %p146
    %p148 = scmp.ne.s32.totalorder %s134, %s135
    %p149 = scmp.eq.s32.totalorder %s17, 3
    %p150 = por %p148, %p149
    %p152 = scmp.ne.s32.totalorder %s135, %s151
    %p153 = scmp.eq.s32.totalorder %s17, 0
    %p154 = por %p152, %p153
    %p155 = scmp.le.s32.totalorder 1, %s11
    %p156 = scmp.lt.s32.totalorder %s11, 5
    %p157 = pnand %p155, %p156
    %p158 = pneg %p157
    // Predicated region
    $region9: #{tpu_custom_call.1} parent=5 // pred_check
      _
    $region10: #{tpu_custom_call.1} parent=5 // pred_check_branch
      %160 = sbr.rel (%p157) target = $region12
    $region11: #{tpu_custom_call.1} parent=5 // pred_region
      %s161 = ssub.s32 %s11, 1
      // Predicated region
      $region13: #{tpu_custom_call.1} parent=11 // pred_check
        %p162 = pneg %p58
      $region14: #{tpu_custom_call.1} parent=11 // pred_check_branch
        %164 = sbr.rel (%p162) target = $region16
      $region15: #{tpu_custom_call.1} parent=11 // pred_region
        _
      $region16: #{tpu_custom_call.1} parent=11 // pred_fallthru
        _
      // Predicated region
      $region17: #{tpu_custom_call.1} parent=11 // pred_check
        %p165 = pneg %p79
      $region18: #{tpu_custom_call.1} parent=11 // pred_check_branch
        %167 = sbr.rel (%p165) target = $region20
      $region19: #{tpu_custom_call.1} parent=11 // pred_region
        _
      $region20: #{tpu_custom_call.1} parent=11 // pred_fallthru
        _
      // Predicated region
      $region21: #{tpu_custom_call.1} parent=11 // pred_check
        %p168 = pneg %p100
      $region22: #{tpu_custom_call.1} parent=11 // pred_check_branch
        %170 = sbr.rel (%p168) target = $region24
      $region23: #{tpu_custom_call.1} parent=11 // pred_region
        _
      $region24: #{tpu_custom_call.1} parent=11 // pred_fallthru
        _
      // Predicated region
      $region25: #{tpu_custom_call.1} parent=11 // pred_check
        %p171 = pneg %p121
      $region26: #{tpu_custom_call.1} parent=11 // pred_check_branch
        %173 = sbr.rel (%p171) target = $region28
      $region27: #{tpu_custom_call.1} parent=11 // pred_region
        _
      $region28: #{tpu_custom_call.1} parent=11 // pred_fallthru
        _
    $region12: #{tpu_custom_call.1} parent=5 // pred_fallthru
      _
    %p174 = scmp.lt.s32.totalorder %s11, 4
    // Predicated region
    $region29: #{tpu_custom_call.1} parent=5 // pred_check
      %p175 = pneg %p174
    $region30: #{tpu_custom_call.1} parent=5 // pred_check_branch
      %177 = sbr.rel (%p175) target = $region32
    $region31: #{tpu_custom_call.1} parent=5 // pred_region
      // Predicated region
      $region33: #{tpu_custom_call.1} parent=31 // pred_check
        %p178 = pneg %p31
      $region34: #{tpu_custom_call.1} parent=31 // pred_check_branch
        %180 = sbr.rel (%p178) target = $region36
      $region35: #{tpu_custom_call.1} parent=31 // pred_region
        %s181 = smul.u32 32, %s11
        %p182 = scmp.lt.s32.totalorder %s181, 127
        %s183 = scalar_select %p182, %s181, 127
        %s184 = smul.addr %s183, 8
        %s185 = scalar_lea.vmem %s0, %s184
        %s186 = smul.u32 32, %s11
      $region36: #{tpu_custom_call.1} parent=31 // pred_fallthru
        _
    $region32: #{tpu_custom_call.1} parent=5 // pred_fallthru
      _
    %p187 = scmp.le.s32.totalorder 1, %s11
    %p188 = scmp.lt.s32.totalorder %s11, 5
    %p189 = pnand %p187, %p188
    %p190 = pneg %p189
    // Predicated region
    $region37: #{tpu_custom_call.1} parent=5 // pred_check
      _
    $region38: #{tpu_custom_call.1} parent=5 // pred_check_branch
      %192 = sbr.rel (%p189) target = $region40
    $region39: #{tpu_custom_call.1} parent=5 // pred_region
      %s193 = ssub.s32 %s11, 1
      %s194 = smul.u32 32, %s16
      %p195 = scmp.lt.s32.totalorder %s194, 127
      %s196 = scalar_select %p195, %s194, 127
      %s197 = smul.addr %s196, 8
      %s198 = scalar_lea.vmem %s0, %s197
      %p199 = pneg %p37
      %p200 = pneg %p34
      %p201 = pneg %p58
      %p202 = pneg %p55
      %p203 = pneg %p79
      %p204 = pneg %p76
      %p205 = pneg %p100
      %p206 = pneg %p97
      %p207 = pneg %p121
      %p208 = pneg %p118
      %p209 = pneg %p147
      %p210 = pneg %p144
      %s211 = smul.u32 4, %s16
      %p212 = scmp.lt.s32.totalorder %s211, 15
      %s213 = scalar_select %p212, %s211, 15
      %s214 = smul.addr %s213, 8
      %s215 = scalar_lea.vmem %s5, %s214
      %s216 = smul.u32 32, %s16
      %p217 = scmp.lt.s32.totalorder %s216, 127
      %s218 = scalar_select %p217, %s216, 127
      %s219 = smul.addr %s218, 8
      %s220 = scalar_lea.vmem %s0, %s219
      %s221 = smul.u32 32, %s16
      %s222 = smul.u32 4, %s16
      %p223 = scmp.lt.s32.totalorder %s222, 15
      %s224 = scalar_select %p223, %s222, 15
      %s225 = smul.addr %s224, 8
      %s226 = scalar_lea.vmem %s5, %s225
      %s227 = smul.u32 4, %s16
      %v228 = vld [vmem:[%s220] sm:$0xff]
      %v229 = vld [vmem:[%s220 + $0x8] sm:$0xff]
      %v230 = vld [vmem:[%s220 + $0x10] sm:$0xff]
      %v231 = vld [vmem:[%s220 + $0x18] sm:$0xff]
      %v232 = vld [vmem:[%s220 + $0x20] sm:$0xff]
      %v233 = vld [vmem:[%s220 + $0x28] sm:$0xff]
      %v234 = vld [vmem:[%s220 + $0x30] sm:$0xff]
      %v235 = vld [vmem:[%s220 + $0x38] sm:$0xff]
      %v236 = vld [vmem:[%s220 + $0x40] sm:$0xff]
      %v237 = vld [vmem:[%s220 + $0x48] sm:$0xff]
      %v238 = vld [vmem:[%s220 + $0x50] sm:$0xff]
      %v239 = vld [vmem:[%s220 + $0x58] sm:$0xff]
      %v240 = vld [vmem:[%s220 + $0x60] sm:$0xff]
      %v241 = vld [vmem:[%s220 + $0x68] sm:$0xff]
      %v242 = vld [vmem:[%s220 + $0x70] sm:$0xff]
      %v243 = vld [vmem:[%s220 + $0x78] sm:$0xff]
      %v244 = vld [vmem:[%s220 + $0x80] sm:$0xff]
      %v245 = vld [vmem:[%s220 + $0x88] sm:$0xff]
      %v246 = vld [vmem:[%s220 + $0x90] sm:$0xff]
      %v247 = vld [vmem:[%s220 + $0x98] sm:$0xff]
      %v248 = vld [vmem:[%s220 + $0xa0] sm:$0xff]
      %v249 = vld [vmem:[%s220 + $0xa8] sm:$0xff]
      %v250 = vld [vmem:[%s220 + $0xb0] sm:$0xff]
      %v251 = vld [vmem:[%s220 + $0xb8] sm:$0xff]
      %v252 = vld [vmem:[%s220 + $0xc0] sm:$0xff]
      %v253 = vld [vmem:[%s220 + $0xc8] sm:$0xff]
      %v254 = vld [vmem:[%s220 + $0xd0] sm:$0xff]
      %v255 = vld [vmem:[%s220 + $0xd8] sm:$0xff]
      %v256 = vld [vmem:[%s220 + $0xe0] sm:$0xff]
      %v257 = vld [vmem:[%s220 + $0xe8] sm:$0xff]
      %v258 = vld [vmem:[%s220 + $0xf0] sm:$0xff]
      %v259 = vld [vmem:[%s220 + $0xf8] sm:$0xff]
      %v260 = vld [vmem:[%s1] sm:$0xff]
      %v261 = vld [vmem:[%s1 + $0x8] sm:$0xff]
      %v262 = vld [vmem:[%s1 + $0x10] sm:$0xff]
      %v263 = vld [vmem:[%s1 + $0x18] sm:$0xff]
      %v264 = vld [vmem:[%s3] sm:$0xff]
      %v265 = vld [vmem:[%s3 + $0x8] sm:$0xff]
      %v266 = vld [vmem:[%s3 + $0x10] sm:$0xff]
      %v267 = vld [vmem:[%s3 + $0x18] sm:$0xff]
      %v268 = vld [vmem:[%s2] sm:$0x1]
      %v270 = vlaneseq
      %v271 = vshrl.u32 %v270, 7
      %v272 = vsub.s32 0, %v271
      %v273 = vrot.slane %v268, %v272
      %vm275 = vcmask 261120
      %v277 = vsel %vm275, %v228, 0
      %v280 = vsel %vm275, %v229, 0
      %v283 = vsel %vm275, %v230, 0
      %v286 = vsel %vm275, %v231, 0
      %v289 = vsel %vm275, %v232, 0
      %v292 = vsel %vm275, %v233, 0
      %v295 = vsel %vm275, %v234, 0
      %v298 = vsel %vm275, %v235, 0
      %v301 = vsel %vm275, %v236, 0
      %v304 = vsel %vm275, %v237, 0
      %v307 = vsel %vm275, %v238, 0
      %v310 = vsel %vm275, %v239, 0
      %v313 = vsel %vm275, %v240, 0
      %v316 = vsel %vm275, %v241, 0
      %v319 = vsel %vm275, %v242, 0
      %v322 = vsel %vm275, %v243, 0
      %v325 = vsel %vm275, %v244, 0
      %v328 = vsel %vm275, %v245, 0
      %v331 = vsel %vm275, %v246, 0
      %v334 = vsel %vm275, %v247, 0
      %v337 = vsel %vm275, %v248, 0
      %v340 = vsel %vm275, %v249, 0
      %v343 = vsel %vm275, %v250, 0
      %v346 = vsel %vm275, %v251, 0
      %v349 = vsel %vm275, %v252, 0
      %v352 = vsel %vm275, %v253, 0
      %v355 = vsel %vm275, %v254, 0
      %v358 = vsel %vm275, %v255, 0
      %v361 = vsel %vm275, %v256, 0
      %v364 = vsel %vm275, %v257, 0
      %v367 = vsel %vm275, %v258, 0
      %v370 = vsel %vm275, %v259, 0
      %v373 = vsel %vm275, %v260, 0
      %v376 = vsel %vm275, %v261, 0
      %v379 = vsel %vm275, %v262, 0
      %v382 = vsel %vm275, %v263, 0
      %384 = vmatprep.subr.mxu0 0.0
      %385 = vmatpush1.xpose.msra.mxu0 0.0
      %386 = vmatprep.subr.mxu0 0.0
      %387 = vmatpush1.xpose.msra.mxu0 0.0
      %388 = vmatprep.subr.mxu0 0.0
      %389 = vmatpush1.xpose.msra.mxu0 0.0
      %390 = vmatprep.subr.mxu0 0.0
      %391 = vmatpush1.xpose.msra.mxu0 0.0
      %392 = vmatprep.subr.mxu0 0.0
      %393 = vmatpush1.xpose.msra.mxu0 0.0
      %394 = vmatprep.subr.mxu0 0.0
      %395 = vmatpush1.xpose.msra.mxu0 0.0
      %396 = vmatprep.subr.mxu0 0.0
      %397 = vmatpush1.xpose.msra.mxu0 0.0
      %398 = vmatprep.subr.mxu0 0.0
      %399 = vmatpush1.xpose.msra.mxu0 0.0
      %400 = vmatprep.subr.mxu0 0.0
      %401 = vmatpush1.xpose.msra.mxu0 0.0
      %402 = vmatprep.subr.mxu0 0.0
      %403 = vmatpush1.xpose.msra.mxu0 0.0
      %404 = vmatprep.subr.mxu0 0.0
      %405 = vmatpush1.xpose.msra.mxu0 0.0
      %406 = vmatprep.subr.mxu0 0.0
      %407 = vmatpush1.xpose.msra.mxu0 0.0
      %408 = vmatprep.subr.mxu0 0.0
      %409 = vmatpush1.xpose.msra.mxu0 %v382
      %410 = vmatprep.subr.mxu0 0.0
      %411 = vmatpush1.xpose.msra.mxu0 %v379
      %412 = vmatprep.subr.mxu0 0.0
      %413 = vmatpush1.xpose.msra.mxu0 %v376
      %414 = vmatprep.subr.mxu0 0.0
      %415 = vmatpush1.xpose.msra.mxu0 %v373
      %416 = vmatprep.subr.mxu0 0.0
      %417 = vmatpush2.xpose.msra.mxu0 0.0
      %418 = vmatprep.subr.mxu0 0.0
      %419 = vmatpush2.xpose.msra.mxu0 0.0
      %420 = vmatprep.subr.mxu0 0.0
      %421 = vmatpush2.xpose.msra.mxu0 0.0
      %422 = vmatprep.subr.mxu0 0.0
      %423 = vmatpush2.xpose.msra.mxu0 0.0
      %424 = vmatprep.subr.mxu0 0.0
      %425 = vmatpush2.xpose.msra.mxu0 0.0
      %426 = vmatprep.subr.mxu0 0.0
      %427 = vmatpush2.xpose.msra.mxu0 0.0
      %428 = vmatprep.subr.mxu0 0.0
      %429 = vmatpush2.xpose.msra.mxu0 0.0
      %430 = vmatprep.subr.mxu0 0.0
      %431 = vmatpush2.xpose.msra.mxu0 0.0
      %432 = vmatprep.subr.mxu0 0.0
      %433 = vmatpush2.xpose.msra.mxu0 0.0
      %434 = vmatprep.subr.mxu0 0.0
      %435 = vmatpush2.xpose.msra.mxu0 0.0
      %436 = vmatprep.subr.mxu0 0.0
      %437 = vmatpush2.xpose.msra.mxu0 0.0
      %438 = vmatprep.subr.mxu0 0.0
      %439 = vmatpush2.xpose.msra.mxu0 0.0
      %440 = vmatprep.subr.mxu0 0.0
      %441 = vmatpush2.xpose.msra.mxu0 0.0
      %442 = vmatprep.subr.mxu0 0.0
      %443 = vmatpush2.xpose.msra.mxu0 0.0
      %444 = vmatprep.subr.mxu0 0.0
      %445 = vmatpush2.xpose.msra.mxu0 0.0
      %446 = vmatprep.subr.mxu0 0.0
      %447 = vmatpush2.xpose.msra.mxu0 0.0
      %448 = vmatprep.mubr.f32.mxu0 0.0
      %449 = vmatmul.mubr.f32.gmra.mxu0 %v277
      %v450 = vpop.f32.mrf.mxu0
      %v451 = vadd.f32 %v273, %v450
      %v452 = vpop.f32.mrf.mxu0
      %453 = vmatprep.mubr.f32.mxu0 0.0
      %454 = vmatmul.mubr.f32.gmra.mxu0 %v280
      %v455 = vpop.f32.mrf.mxu0
      %v456 = vadd.f32 %v273, %v455
      %v457 = vpop.f32.mrf.mxu0
      %458 = vmatprep.mubr.f32.mxu0 0.0
      %459 = vmatmul.mubr.f32.gmra.mxu0 %v283
      %v460 = vpop.f32.mrf.mxu0
      %v461 = vadd.f32 %v273, %v460
      %v462 = vpop.f32.mrf.mxu0
      %463 = vmatprep.mubr.f32.mxu0 0.0
      %464 = vmatmul.mubr.f32.gmra.mxu0 %v286
      %v465 = vpop.f32.mrf.mxu0
      %v466 = vadd.f32 %v273, %v465
      %v467 = vpop.f32.mrf.mxu0
      %468 = vmatprep.mubr.f32.mxu0 0.0
      %469 = vmatmul.mubr.f32.gmra.mxu0 %v289
      %v470 = vpop.f32.mrf.mxu0
      %v471 = vadd.f32 %v273, %v470
      %v472 = vpop.f32.mrf.mxu0
      %473 = vmatprep.mubr.f32.mxu0 0.0
      %474 = vmatmul.mubr.f32.gmra.mxu0 %v292
      %v475 = vpop.f32.mrf.mxu0
      %v476 = vadd.f32 %v273, %v475
      %v477 = vpop.f32.mrf.mxu0
      %478 = vmatprep.mubr.f32.mxu0 0.0
      %479 = vmatmul.mubr.f32.gmra.mxu0 %v295
      %v480 = vpop.f32.mrf.mxu0
      %v481 = vadd.f32 %v273, %v480
      %v482 = vpop.f32.mrf.mxu0
      %483 = vmatprep.mubr.f32.mxu0 0.0
      %484 = vmatmul.mubr.f32.gmra.mxu0 %v298
      %v485 = vpop.f32.mrf.mxu0
      %v486 = vadd.f32 %v273, %v485
      %v487 = vpop.f32.mrf.mxu0
      %488 = vmatprep.mubr.f32.mxu0 0.0
      %489 = vmatmul.mubr.f32.gmra.mxu0 %v301
      %v490 = vpop.f32.mrf.mxu0
      %v491 = vadd.f32 %v273, %v490
      %v492 = vpop.f32.mrf.mxu0
      %493 = vmatprep.mubr.f32.mxu0 0.0
      %494 = vmatmul.mubr.f32.gmra.mxu0 %v304
      %v495 = vpop.f32.mrf.mxu0
      %v496 = vadd.f32 %v273, %v495
      %v497 = vpop.f32.mrf.mxu0
      %498 = vmatprep.mubr.f32.mxu0 0.0
      %499 = vmatmul.mubr.f32.gmra.mxu0 %v307
      %v500 = vpop.f32.mrf.mxu0
      %v501 = vadd.f32 %v273, %v500
      %v502 = vpop.f32.mrf.mxu0
      %503 = vmatprep.mubr.f32.mxu0 0.0
      %504 = vmatmul.mubr.f32.gmra.mxu0 %v310
      %v505 = vpop.f32.mrf.mxu0
      %v506 = vadd.f32 %v273, %v505
      %v507 = vpop.f32.mrf.mxu0
      %508 = vmatprep.mubr.f32.mxu0 0.0
      %509 = vmatmul.mubr.f32.gmra.mxu0 %v313
      %v510 = vpop.f32.mrf.mxu0
      %v511 = vadd.f32 %v273, %v510
      %v512 = vpop.f32.mrf.mxu0
      %513 = vmatprep.mubr.f32.mxu0 0.0
      %514 = vmatmul.mubr.f32.gmra.mxu0 %v316
      %v515 = vpop.f32.mrf.mxu0
      %v516 = vadd.f32 %v273, %v515
      %v517 = vpop.f32.mrf.mxu0
      %518 = vmatprep.mubr.f32.mxu0 0.0
      %519 = vmatmul.mubr.f32.gmra.mxu0 %v319
      %v520 = vpop.f32.mrf.mxu0
      %v521 = vadd.f32 %v273, %v520
      %v522 = vpop.f32.mrf.mxu0
      %523 = vmatprep.mubr.f32.mxu0 0.0
      %524 = vmatmul.mubr.f32.gmra.mxu0 %v322
      %v525 = vpop.f32.mrf.mxu0
      %v526 = vadd.f32 %v273, %v525
      %v527 = vpop.f32.mrf.mxu0
      %528 = vmatprep.mubr.f32.mxu0 0.0
      %529 = vmatmul.mubr.f32.gmra.mxu0 %v325
      %v530 = vpop.f32.mrf.mxu0
      %v531 = vadd.f32 %v273, %v530
      %v532 = vpop.f32.mrf.mxu0
      %533 = vmatprep.mubr.f32.mxu0 0.0
      %534 = vmatmul.mubr.f32.gmra.mxu0 %v328
      %v535 = vpop.f32.mrf.mxu0
      %v536 = vadd.f32 %v273, %v535
      %v537 = vpop.f32.mrf.mxu0
      %538 = vmatprep.mubr.f32.mxu0 0.0
      %539 = vmatmul.mubr.f32.gmra.mxu0 %v331
      %v540 = vpop.f32.mrf.mxu0
      %v541 = vadd.f32 %v273, %v540
      %v542 = vpop.f32.mrf.mxu0
      %543 = vmatprep.mubr.f32.mxu0 0.0
      %544 = vmatmul.mubr.f32.gmra.mxu0 %v334
      %v545 = vpop.f32.mrf.mxu0
      %v546 = vadd.f32 %v273, %v545
      %v547 = vpop.f32.mrf.mxu0
      %548 = vmatprep.mubr.f32.mxu0 0.0
      %549 = vmatmul.mubr.f32.gmra.mxu0 %v337
      %v550 = vpop.f32.mrf.mxu0
      %v551 = vadd.f32 %v273, %v550
      %v552 = vpop.f32.mrf.mxu0
      %553 = vmatprep.mubr.f32.mxu0 0.0
      %554 = vmatmul.mubr.f32.gmra.mxu0 %v340
      %v555 = vpop.f32.mrf.mxu0
      %v556 = vadd.f32 %v273, %v555
      %v557 = vpop.f32.mrf.mxu0
      %558 = vmatprep.mubr.f32.mxu0 0.0
      %559 = vmatmul.mubr.f32.gmra.mxu0 %v343
      %v560 = vpop.f32.mrf.mxu0
      %v561 = vadd.f32 %v273, %v560
      %v562 = vpop.f32.mrf.mxu0
      %563 = vmatprep.mubr.f32.mxu0 0.0
      %564 = vmatmul.mubr.f32.gmra.mxu0 %v346
      %v565 = vpop.f32.mrf.mxu0
      %v566 = vadd.f32 %v273, %v565
      %v567 = vpop.f32.mrf.mxu0
      %568 = vmatprep.mubr.f32.mxu0 0.0
      %569 = vmatmul.mubr.f32.gmra.mxu0 %v349
      %v570 = vpop.f32.mrf.mxu0
      %v571 = vadd.f32 %v273, %v570
      %v572 = vpop.f32.mrf.mxu0
      %573 = vmatprep.mubr.f32.mxu0 0.0
      %574 = vmatmul.mubr.f32.gmra.mxu0 %v352
      %v575 = vpop.f32.mrf.mxu0
      %v576 = vadd.f32 %v273, %v575
      %v577 = vpop.f32.mrf.mxu0
      %578 = vmatprep.mubr.f32.mxu0 0.0
      %579 = vmatmul.mubr.f32.gmra.mxu0 %v355
      %v580 = vpop.f32.mrf.mxu0
      %v581 = vadd.f32 %v273, %v580
      %v582 = vpop.f32.mrf.mxu0
      %583 = vmatprep.mubr.f32.mxu0 0.0
      %584 = vmatmul.mubr.f32.gmra.mxu0 %v358
      %v585 = vpop.f32.mrf.mxu0
      %v586 = vadd.f32 %v273, %v585
      %v587 = vpop.f32.mrf.mxu0
      %588 = vmatprep.mubr.f32.mxu0 0.0
      %589 = vmatmul.mubr.f32.gmra.mxu0 %v361
      %v590 = vpop.f32.mrf.mxu0
      %v591 = vadd.f32 %v273, %v590
      %v592 = vpop.f32.mrf.mxu0
      %593 = vmatprep.mubr.f32.mxu0 0.0
      %594 = vmatmul.mubr.f32.gmra.mxu0 %v364
      %v595 = vpop.f32.mrf.mxu0
      %v596 = vadd.f32 %v273, %v595
      %v597 = vpop.f32.mrf.mxu0
      %598 = vmatprep.mubr.f32.mxu0 0.0
      %599 = vmatmul.mubr.f32.gmra.mxu0 %v367
      %v600 = vpop.f32.mrf.mxu0
      %v601 = vadd.f32 %v273, %v600
      %v602 = vpop.f32.mrf.mxu0
      %603 = vmatprep.mubr.f32.mxu0 0.0
      %604 = vmatmul.mubr.f32.gmra.mxu0 %v370
      %v605 = vpop.f32.mrf.mxu0
      %v606 = vadd.f32 %v273, %v605
      %v607 = vpop.f32.mrf.mxu0
      %608 = vdwg.mxu0
      %v609 = vmax.f32 %v451, 0.0
      %v610 = vmax.f32 %v456, 0.0
      %v611 = vmax.f32 %v461, 0.0
      %v612 = vmax.f32 %v466, 0.0
      %v613 = vmax.f32 %v471, 0.0
      %v614 = vmax.f32 %v476, 0.0
      %v615 = vmax.f32 %v481, 0.0
      %v616 = vmax.f32 %v486, 0.0
      %v617 = vmax.f32 %v491, 0.0
      %v618 = vmax.f32 %v496, 0.0
      %v619 = vmax.f32 %v501, 0.0
      %v620 = vmax.f32 %v506, 0.0
      %v621 = vmax.f32 %v511, 0.0
      %v622 = vmax.f32 %v516, 0.0
      %v623 = vmax.f32 %v521, 0.0
      %v624 = vmax.f32 %v526, 0.0
      %v625 = vmax.f32 %v531, 0.0
      %v626 = vmax.f32 %v536, 0.0
      %v627 = vmax.f32 %v541, 0.0
      %v628 = vmax.f32 %v546, 0.0
      %v629 = vmax.f32 %v551, 0.0
      %v630 = vmax.f32 %v556, 0.0
      %v631 = vmax.f32 %v561, 0.0
      %v632 = vmax.f32 %v566, 0.0
      %v633 = vmax.f32 %v571, 0.0
      %v634 = vmax.f32 %v576, 0.0
      %v635 = vmax.f32 %v581, 0.0
      %v636 = vmax.f32 %v586, 0.0
      %v637 = vmax.f32 %v591, 0.0
      %v638 = vmax.f32 %v596, 0.0
      %v639 = vmax.f32 %v601, 0.0
      %v640 = vmax.f32 %v606, 0.0
      %v641 = vld [vmem:[%s4] sm:$0x1]
      %v643 = vlaneseq
      %v644 = vshrl.u32 %v643, 7
      %v645 = vsub.s32 0, %v644
      %v646 = vrot.slane %v641, %v645
      %v649 = vsel %vm275, %v609, 0
      %v652 = vsel %vm275, %v610, 0
      %v655 = vsel %vm275, %v611, 0
      %v658 = vsel %vm275, %v612, 0
      %v661 = vsel %vm275, %v613, 0
      %v664 = vsel %vm275, %v614, 0
      %v667 = vsel %vm275, %v615, 0
      %v670 = vsel %vm275, %v616, 0
      %v673 = vsel %vm275, %v617, 0
      %v676 = vsel %vm275, %v618, 0
      %v679 = vsel %vm275, %v619, 0
      %v682 = vsel %vm275, %v620, 0
      %v685 = vsel %vm275, %v621, 0
      %v688 = vsel %vm275, %v622, 0
      %v691 = vsel %vm275, %v623, 0
      %v694 = vsel %vm275, %v624, 0
      %v697 = vsel %vm275, %v625, 0
      %v700 = vsel %vm275, %v626, 0
      %v703 = vsel %vm275, %v627, 0
      %v706 = vsel %vm275, %v628, 0
      %v709 = vsel %vm275, %v629, 0
      %v712 = vsel %vm275, %v630, 0
      %v715 = vsel %vm275, %v631, 0
      %v718 = vsel %vm275, %v632, 0
      %v721 = vsel %vm275, %v633, 0
      %v724 = vsel %vm275, %v634, 0
      %v727 = vsel %vm275, %v635, 0
      %v730 = vsel %vm275, %v636, 0
      %v733 = vsel %vm275, %v637, 0
      %v736 = vsel %vm275, %v638, 0
      %v739 = vsel %vm275, %v639, 0
      %v742 = vsel %vm275, %v640, 0
      %v745 = vsel %vm275, %v264, 0
      %v748 = vsel %vm275, %v265, 0
      %v751 = vsel %vm275, %v266, 0
      %v754 = vsel %vm275, %v267, 0
      %756 = vmatprep.subr.mxu0 0.0
      %757 = vmatpush1.xpose.msra.mxu0 0.0
      %758 = vmatprep.subr.mxu0 0.0
      %759 = vmatpush1.xpose.msra.mxu0 0.0
      %760 = vmatprep.subr.mxu0 0.0
      %761 = vmatpush1.xpose.msra.mxu0 0.0
      %762 = vmatprep.subr.mxu0 0.0
      %763 = vmatpush1.xpose.msra.mxu0 0.0
      %764 = vmatprep.subr.mxu0 0.0
      %765 = vmatpush1.xpose.msra.mxu0 0.0
      %766 = vmatprep.subr.mxu0 0.0
      %767 = vmatpush1.xpose.msra.mxu0 0.0
      %768 = vmatprep.subr.mxu0 0.0
      %769 = vmatpush1.xpose.msra.mxu0 0.0
      %770 = vmatprep.subr.mxu0 0.0
      %771 = vmatpush1.xpose.msra.mxu0 0.0
      %772 = vmatprep.subr.mxu0 0.0
      %773 = vmatpush1.xpose.msra.mxu0 0.0
      %774 = vmatprep.subr.mxu0 0.0
      %775 = vmatpush1.xpose.msra.mxu0 0.0
      %776 = vmatprep.subr.mxu0 0.0
      %777 = vmatpush1.xpose.msra.mxu0 0.0
      %778 = vmatprep.subr.mxu0 0.0
      %779 = vmatpush1.xpose.msra.mxu0 0.0
      %780 = vmatprep.subr.mxu0 0.0
      %781 = vmatpush1.xpose.msra.mxu0 %v754
      %782 = vmatprep.subr.mxu0 0.0
      %783 = vmatpush1.xpose.msra.mxu0 %v751
      %784 = vmatprep.subr.mxu0 0.0
      %785 = vmatpush1.xpose.msra.mxu0 %v748
      %786 = vmatprep.subr.mxu0 0.0
      %787 = vmatpush1.xpose.msra.mxu0 %v745
      %788 = vmatprep.subr.mxu0 0.0
      %789 = vmatpush2.xpose.msra.mxu0 0.0
      %790 = vmatprep.subr.mxu0 0.0
      %791 = vmatpush2.xpose.msra.mxu0 0.0
      %792 = vmatprep.subr.mxu0 0.0
      %793 = vmatpush2.xpose.msra.mxu0 0.0
      %794 = vmatprep.subr.mxu0 0.0
      %795 = vmatpush2.xpose.msra.mxu0 0.0
      %796 = vmatprep.subr.mxu0 0.0
      %797 = vmatpush2.xpose.msra.mxu0 0.0
      %798 = vmatprep.subr.mxu0 0.0
      %799 = vmatpush2.xpose.msra.mxu0 0.0
      %800 = vmatprep.subr.mxu0 0.0
      %801 = vmatpush2.xpose.msra.mxu0 0.0
      %802 = vmatprep.subr.mxu0 0.0
      %803 = vmatpush2.xpose.msra.mxu0 0.0
      %804 = vmatprep.subr.mxu0 0.0
      %805 = vmatpush2.xpose.msra.mxu0 0.0
      %806 = vmatprep.subr.mxu0 0.0
      %807 = vmatpush2.xpose.msra.mxu0 0.0
      %808 = vmatprep.subr.mxu0 0.0
      %809 = vmatpush2.xpose.msra.mxu0 0.0
      %810 = vmatprep.subr.mxu0 0.0
      %811 = vmatpush2.xpose.msra.mxu0 0.0
      %812 = vmatprep.subr.mxu0 0.0
      %813 = vmatpush2.xpose.msra.mxu0 0.0
      %814 = vmatprep.subr.mxu0 0.0
      %815 = vmatpush2.xpose.msra.mxu0 0.0
      %816 = vmatprep.subr.mxu0 0.0
      %817 = vmatpush2.xpose.msra.mxu0 0.0
      %818 = vmatprep.subr.mxu0 0.0
      %819 = vmatpush2.xpose.msra.mxu0 0.0
      %820 = vmatprep.mubr.f32.mxu0 0.0
      %821 = vmatmul.mubr.f32.gmra.mxu0 %v649
      %v822 = vpop.f32.mrf.mxu0
      %v823 = vadd.f32 %v646, %v822
      %v824 = vpop.f32.mrf.mxu0
      %825 = vmatprep.mubr.f32.mxu0 0.0
      %826 = vmatmul.mubr.f32.gmra.mxu0 %v652
      %v827 = vpop.f32.mrf.mxu0
      %v828 = vadd.f32 %v646, %v827
      %v829 = vpop.f32.mrf.mxu0
      %830 = vmatprep.mubr.f32.mxu0 0.0
      %831 = vmatmul.mubr.f32.gmra.mxu0 %v655
      %v832 = vpop.f32.mrf.mxu0
      %v833 = vadd.f32 %v646, %v832
      %v834 = vpop.f32.mrf.mxu0
      %835 = vmatprep.mubr.f32.mxu0 0.0
      %836 = vmatmul.mubr.f32.gmra.mxu0 %v658
      %v837 = vpop.f32.mrf.mxu0
      %v838 = vadd.f32 %v646, %v837
      %v839 = vpop.f32.mrf.mxu0
      %840 = vmatprep.mubr.f32.mxu0 0.0
      %841 = vmatmul.mubr.f32.gmra.mxu0 %v661
      %v842 = vpop.f32.mrf.mxu0
      %v843 = vadd.f32 %v646, %v842
      %v844 = vpop.f32.mrf.mxu0
      %845 = vmatprep.mubr.f32.mxu0 0.0
      %846 = vmatmul.mubr.f32.gmra.mxu0 %v664
      %v847 = vpop.f32.mrf.mxu0
      %v848 = vadd.f32 %v646, %v847
      %v849 = vpop.f32.mrf.mxu0
      %850 = vmatprep.mubr.f32.mxu0 0.0
      %851 = vmatmul.mubr.f32.gmra.mxu0 %v667
      %v852 = vpop.f32.mrf.mxu0
      %v853 = vadd.f32 %v646, %v852
      %v854 = vpop.f32.mrf.mxu0
      %855 = vmatprep.mubr.f32.mxu0 0.0
      %856 = vmatmul.mubr.f32.gmra.mxu0 %v670
      %v857 = vpop.f32.mrf.mxu0
      %v858 = vadd.f32 %v646, %v857
      %v859 = vpop.f32.mrf.mxu0
      %860 = vmatprep.mubr.f32.mxu0 0.0
      %861 = vmatmul.mubr.f32.gmra.mxu0 %v673
      %v862 = vpop.f32.mrf.mxu0
      %v863 = vadd.f32 %v646, %v862
      %v864 = vpop.f32.mrf.mxu0
      %865 = vmatprep.mubr.f32.mxu0 0.0
      %866 = vmatmul.mubr.f32.gmra.mxu0 %v676
      %v867 = vpop.f32.mrf.mxu0
      %v868 = vadd.f32 %v646, %v867
      %v869 = vpop.f32.mrf.mxu0
      %870 = vmatprep.mubr.f32.mxu0 0.0
      %871 = vmatmul.mubr.f32.gmra.mxu0 %v679
      %v872 = vpop.f32.mrf.mxu0
      %v873 = vadd.f32 %v646, %v872
      %v874 = vpop.f32.mrf.mxu0
      %875 = vmatprep.mubr.f32.mxu0 0.0
      %876 = vmatmul.mubr.f32.gmra.mxu0 %v682
      %v877 = vpop.f32.mrf.mxu0
      %v878 = vadd.f32 %v646, %v877
      %v879 = vpop.f32.mrf.mxu0
      %880 = vmatprep.mubr.f32.mxu0 0.0
      %881 = vmatmul.mubr.f32.gmra.mxu0 %v685
      %v882 = vpop.f32.mrf.mxu0
      %v883 = vadd.f32 %v646, %v882
      %v884 = vpop.f32.mrf.mxu0
      %885 = vmatprep.mubr.f32.mxu0 0.0
      %886 = vmatmul.mubr.f32.gmra.mxu0 %v688
      %v887 = vpop.f32.mrf.mxu0
      %v888 = vadd.f32 %v646, %v887
      %v889 = vpop.f32.mrf.mxu0
      %890 = vmatprep.mubr.f32.mxu0 0.0
      %891 = vmatmul.mubr.f32.gmra.mxu0 %v691
      %v892 = vpop.f32.mrf.mxu0
      %v893 = vadd.f32 %v646, %v892
      %v894 = vpop.f32.mrf.mxu0
      %895 = vmatprep.mubr.f32.mxu0 0.0
      %896 = vmatmul.mubr.f32.gmra.mxu0 %v694
      %v897 = vpop.f32.mrf.mxu0
      %v898 = vadd.f32 %v646, %v897
      %v899 = vpop.f32.mrf.mxu0
      %900 = vmatprep.mubr.f32.mxu0 0.0
      %901 = vmatmul.mubr.f32.gmra.mxu0 %v697
      %v902 = vpop.f32.mrf.mxu0
      %v903 = vadd.f32 %v646, %v902
      %v904 = vpop.f32.mrf.mxu0
      %905 = vmatprep.mubr.f32.mxu0 0.0
      %906 = vmatmul.mubr.f32.gmra.mxu0 %v700
      %v907 = vpop.f32.mrf.mxu0
      %v908 = vadd.f32 %v646, %v907
      %v909 = vpop.f32.mrf.mxu0
      %910 = vmatprep.mubr.f32.mxu0 0.0
      %911 = vmatmul.mubr.f32.gmra.mxu0 %v703
      %v912 = vpop.f32.mrf.mxu0
      %v913 = vadd.f32 %v646, %v912
      %v914 = vpop.f32.mrf.mxu0
      %915 = vmatprep.mubr.f32.mxu0 0.0
      %916 = vmatmul.mubr.f32.gmra.mxu0 %v706
      %v917 = vpop.f32.mrf.mxu0
      %v918 = vadd.f32 %v646, %v917
      %v919 = vpop.f32.mrf.mxu0
      %920 = vmatprep.mubr.f32.mxu0 0.0
      %921 = vmatmul.mubr.f32.gmra.mxu0 %v709
      %v922 = vpop.f32.mrf.mxu0
      %v923 = vadd.f32 %v646, %v922
      %v924 = vpop.f32.mrf.mxu0
      %925 = vmatprep.mubr.f32.mxu0 0.0
      %926 = vmatmul.mubr.f32.gmra.mxu0 %v712
      %v927 = vpop.f32.mrf.mxu0
      %v928 = vadd.f32 %v646, %v927
      %v929 = vpop.f32.mrf.mxu0
      %930 = vmatprep.mubr.f32.mxu0 0.0
      %931 = vmatmul.mubr.f32.gmra.mxu0 %v715
      %v932 = vpop.f32.mrf.mxu0
      %v933 = vadd.f32 %v646, %v932
      %v934 = vpop.f32.mrf.mxu0
      %935 = vmatprep.mubr.f32.mxu0 0.0
      %936 = vmatmul.mubr.f32.gmra.mxu0 %v718
      %v937 = vpop.f32.mrf.mxu0
      %v938 = vadd.f32 %v646, %v937
      %v939 = vpop.f32.mrf.mxu0
      %940 = vmatprep.mubr.f32.mxu0 0.0
      %941 = vmatmul.mubr.f32.gmra.mxu0 %v721
      %v942 = vpop.f32.mrf.mxu0
      %v943 = vadd.f32 %v646, %v942
      %v944 = vpop.f32.mrf.mxu0
      %945 = vmatprep.mubr.f32.mxu0 0.0
      %946 = vmatmul.mubr.f32.gmra.mxu0 %v724
      %v947 = vpop.f32.mrf.mxu0
      %v948 = vadd.f32 %v646, %v947
      %v949 = vpop.f32.mrf.mxu0
      %950 = vmatprep.mubr.f32.mxu0 0.0
      %951 = vmatmul.mubr.f32.gmra.mxu0 %v727
      %v952 = vpop.f32.mrf.mxu0
      %v953 = vadd.f32 %v646, %v952
      %v954 = vpop.f32.mrf.mxu0
      %955 = vmatprep.mubr.f32.mxu0 0.0
      %956 = vmatmul.mubr.f32.gmra.mxu0 %v730
      %v957 = vpop.f32.mrf.mxu0
      %v958 = vadd.f32 %v646, %v957
      %v959 = vpop.f32.mrf.mxu0
      %960 = vmatprep.mubr.f32.mxu0 0.0
      %961 = vmatmul.mubr.f32.gmra.mxu0 %v733
      %v962 = vpop.f32.mrf.mxu0
      %v963 = vadd.f32 %v646, %v962
      %v964 = vpop.f32.mrf.mxu0
      %965 = vmatprep.mubr.f32.mxu0 0.0
      %966 = vmatmul.mubr.f32.gmra.mxu0 %v736
      %v967 = vpop.f32.mrf.mxu0
      %v968 = vadd.f32 %v646, %v967
      %v969 = vpop.f32.mrf.mxu0
      %970 = vmatprep.mubr.f32.mxu0 0.0
      %971 = vmatmul.mubr.f32.gmra.mxu0 %v739
      %v972 = vpop.f32.mrf.mxu0
      %v973 = vadd.f32 %v646, %v972
      %v974 = vpop.f32.mrf.mxu0
      %975 = vmatprep.mubr.f32.mxu0 0.0
      %976 = vmatmul.mubr.f32.gmra.mxu0 %v742
      %v977 = vpop.f32.mrf.mxu0
      %v978 = vadd.f32 %v646, %v977
      %v979 = vpop.f32.mrf.mxu0
      %980 = vdwg.mxu0
      %v981 = vsel %vm275, %v823, -inf
      %v982 = vrot.slane %v981, 4
      %v983 = vmax.f32 %v981, %v982
      %v984 = vrot.slane %v983, 2
      %v985 = vmax.f32 %v983, %v984
      %v986 = vrot.slane %v985, 1
      %v987 = vmax.f32 %v985, %v986
      %v988 = vsel %vm275, %v828, -inf
      %v989 = vrot.slane %v988, 4
      %v990 = vmax.f32 %v988, %v989
      %v991 = vrot.slane %v990, 2
      %v992 = vmax.f32 %v990, %v991
      %v993 = vrot.slane %v992, 1
      %v994 = vmax.f32 %v992, %v993
      %v995 = vsel %vm275, %v833, -inf
      %v996 = vrot.slane %v995, 4
      %v997 = vmax.f32 %v995, %v996
      %v998 = vrot.slane %v997, 2
      %v999 = vmax.f32 %v997, %v998
      %v1000 = vrot.slane %v999, 1
      %v1001 = vmax.f32 %v999, %v1000
      %v1002 = vsel %vm275, %v838, -inf
      %v1003 = vrot.slane %v1002, 4
      %v1004 = vmax.f32 %v1002, %v1003
      %v1005 = vrot.slane %v1004, 2
      %v1006 = vmax.f32 %v1004, %v1005
      %v1007 = vrot.slane %v1006, 1
      %v1008 = vmax.f32 %v1006, %v1007
      %v1009 = vsel %vm275, %v843, -inf
      %v1010 = vrot.slane %v1009, 4
      %v1011 = vmax.f32 %v1009, %v1010
      %v1012 = vrot.slane %v1011, 2
      %v1013 = vmax.f32 %v1011, %v1012
      %v1014 = vrot.slane %v1013, 1
      %v1015 = vmax.f32 %v1013, %v1014
      %v1016 = vsel %vm275, %v848, -inf
      %v1017 = vrot.slane %v1016, 4
      %v1018 = vmax.f32 %v1016, %v1017
      %v1019 = vrot.slane %v1018, 2
      %v1020 = vmax.f32 %v1018, %v1019
      %v1021 = vrot.slane %v1020, 1
      %v1022 = vmax.f32 %v1020, %v1021
      %v1023 = vsel %vm275, %v853, -inf
      %v1024 = vrot.slane %v1023, 4
      %v1025 = vmax.f32 %v1023, %v1024
      %v1026 = vrot.slane %v1025, 2
      %v1027 = vmax.f32 %v1025, %v1026
      %v1028 = vrot.slane %v1027, 1
      %v1029 = vmax.f32 %v1027, %v1028
      %v1030 = vsel %vm275, %v858, -inf
      %v1031 = vrot.slane %v1030, 4
      %v1032 = vmax.f32 %v1030, %v1031
      %v1033 = vrot.slane %v1032, 2
      %v1034 = vmax.f32 %v1032, %v1033
      %v1035 = vrot.slane %v1034, 1
      %v1036 = vmax.f32 %v1034, %v1035
      %v1037 = vsel %vm275, %v863, -inf
      %v1038 = vrot.slane %v1037, 4
      %v1039 = vmax.f32 %v1037, %v1038
      %v1040 = vrot.slane %v1039, 2
      %v1041 = vmax.f32 %v1039, %v1040
      %v1042 = vrot.slane %v1041, 1
      %v1043 = vmax.f32 %v1041, %v1042
      %v1044 = vsel %vm275, %v868, -inf
      %v1045 = vrot.slane %v1044, 4
      %v1046 = vmax.f32 %v1044, %v1045
      %v1047 = vrot.slane %v1046, 2
      %v1048 = vmax.f32 %v1046, %v1047
      %v1049 = vrot.slane %v1048, 1
      %v1050 = vmax.f32 %v1048, %v1049
      %v1051 = vsel %vm275, %v873, -inf
      %v1052 = vrot.slane %v1051, 4
      %v1053 = vmax.f32 %v1051, %v1052
      %v1054 = vrot.slane %v1053, 2
      %v1055 = vmax.f32 %v1053, %v1054
      %v1056 = vrot.slane %v1055, 1
      %v1057 = vmax.f32 %v1055, %v1056
      %v1058 = vsel %vm275, %v878, -inf
      %v1059 = vrot.slane %v1058, 4
      %v1060 = vmax.f32 %v1058, %v1059
      %v1061 = vrot.slane %v1060, 2
      %v1062 = vmax.f32 %v1060, %v1061
      %v1063 = vrot.slane %v1062, 1
      %v1064 = vmax.f32 %v1062, %v1063
      %v1065 = vsel %vm275, %v883, -inf
      %v1066 = vrot.slane %v1065, 4
      %v1067 = vmax.f32 %v1065, %v1066
      %v1068 = vrot.slane %v1067, 2
      %v1069 = vmax.f32 %v1067, %v1068
      %v1070 = vrot.slane %v1069, 1
      %v1071 = vmax.f32 %v1069, %v1070
      %v1072 = vsel %vm275, %v888, -inf
      %v1073 = vrot.slane %v1072, 4
      %v1074 = vmax.f32 %v1072, %v1073
      %v1075 = vrot.slane %v1074, 2
      %v1076 = vmax.f32 %v1074, %v1075
      %v1077 = vrot.slane %v1076, 1
      %v1078 = vmax.f32 %v1076, %v1077
      %v1079 = vsel %vm275, %v893, -inf
      %v1080 = vrot.slane %v1079, 4
      %v1081 = vmax.f32 %v1079, %v1080
      %v1082 = vrot.slane %v1081, 2
      %v1083 = vmax.f32 %v1081, %v1082
      %v1084 = vrot.slane %v1083, 1
      %v1085 = vmax.f32 %v1083, %v1084
      %v1086 = vsel %vm275, %v898, -inf
      %v1087 = vrot.slane %v1086, 4
      %v1088 = vmax.f32 %v1086, %v1087
      %v1089 = vrot.slane %v1088, 2
      %v1090 = vmax.f32 %v1088, %v1089
      %v1091 = vrot.slane %v1090, 1
      %v1092 = vmax.f32 %v1090, %v1091
      %v1093 = vsel %vm275, %v903, -inf
      %v1094 = vrot.slane %v1093, 4
      %v1095 = vmax.f32 %v1093, %v1094
      %v1096 = vrot.slane %v1095, 2
      %v1097 = vmax.f32 %v1095, %v1096
      %v1098 = vrot.slane %v1097, 1
      %v1099 = vmax.f32 %v1097, %v1098
      %v1100 = vsel %vm275, %v908, -inf
      %v1101 = vrot.slane %v1100, 4
      %v1102 = vmax.f32 %v1100, %v1101
      %v1103 = vrot.slane %v1102, 2
      %v1104 = vmax.f32 %v1102, %v1103
      %v1105 = vrot.slane %v1104, 1
      %v1106 = vmax.f32 %v1104, %v1105
      %v1107 = vsel %vm275, %v913, -inf
      %v1108 = vrot.slane %v1107, 4
      %v1109 = vmax.f32 %v1107, %v1108
      %v1110 = vrot.slane %v1109, 2
      %v1111 = vmax.f32 %v1109, %v1110
      %v1112 = vrot.slane %v1111, 1
      %v1113 = vmax.f32 %v1111, %v1112
      %v1114 = vsel %vm275, %v918, -inf
      %v1115 = vrot.slane %v1114, 4
      %v1116 = vmax.f32 %v1114, %v1115
      %v1117 = vrot.slane %v1116, 2
      %v1118 = vmax.f32 %v1116, %v1117
      %v1119 = vrot.slane %v1118, 1
      %v1120 = vmax.f32 %v1118, %v1119
      %v1121 = vsel %vm275, %v923, -inf
      %v1122 = vrot.slane %v1121, 4
      %v1123 = vmax.f32 %v1121, %v1122
      %v1124 = vrot.slane %v1123, 2
      %v1125 = vmax.f32 %v1123, %v1124
      %v1126 = vrot.slane %v1125, 1
      %v1127 = vmax.f32 %v1125, %v1126
      %v1128 = vsel %vm275, %v928, -inf
      %v1129 = vrot.slane %v1128, 4
      %v1130 = vmax.f32 %v1128, %v1129
      %v1131 = vrot.slane %v1130, 2
      %v1132 = vmax.f32 %v1130, %v1131
      %v1133 = vrot.slane %v1132, 1
      %v1134 = vmax.f32 %v1132, %v1133
      %v1135 = vsel %vm275, %v933, -inf
      %v1136 = vrot.slane %v1135, 4
      %v1137 = vmax.f32 %v1135, %v1136
      %v1138 = vrot.slane %v1137, 2
      %v1139 = vmax.f32 %v1137, %v1138
      %v1140 = vrot.slane %v1139, 1
      %v1141 = vmax.f32 %v1139, %v1140
      %v1142 = vsel %vm275, %v938, -inf
      %v1143 = vrot.slane %v1142, 4
      %v1144 = vmax.f32 %v1142, %v1143
      %v1145 = vrot.slane %v1144, 2
      %v1146 = vmax.f32 %v1144, %v1145
      %v1147 = vrot.slane %v1146, 1
      %v1148 = vmax.f32 %v1146, %v1147
      %v1149 = vsel %vm275, %v943, -inf
      %v1150 = vrot.slane %v1149, 4
      %v1151 = vmax.f32 %v1149, %v1150
      %v1152 = vrot.slane %v1151, 2
      %v1153 = vmax.f32 %v1151, %v1152
      %v1154 = vrot.slane %v1153, 1
      %v1155 = vmax.f32 %v1153, %v1154
      %v1156 = vsel %vm275, %v948, -inf
      %v1157 = vrot.slane %v1156, 4
      %v1158 = vmax.f32 %v1156, %v1157
      %v1159 = vrot.slane %v1158, 2
      %v1160 = vmax.f32 %v1158, %v1159
      %v1161 = vrot.slane %v1160, 1
      %v1162 = vmax.f32 %v1160, %v1161
      %v1163 = vsel %vm275, %v953, -inf
      %v1164 = vrot.slane %v1163, 4
      %v1165 = vmax.f32 %v1163, %v1164
      %v1166 = vrot.slane %v1165, 2
      %v1167 = vmax.f32 %v1165, %v1166
      %v1168 = vrot.slane %v1167, 1
      %v1169 = vmax.f32 %v1167, %v1168
      %v1170 = vsel %vm275, %v958, -inf
      %v1171 = vrot.slane %v1170, 4
      %v1172 = vmax.f32 %v1170, %v1171
      %v1173 = vrot.slane %v1172, 2
      %v1174 = vmax.f32 %v1172, %v1173
      %v1175 = vrot.slane %v1174, 1
      %v1176 = vmax.f32 %v1174, %v1175
      %v1177 = vsel %vm275, %v963, -inf
      %v1178 = vrot.slane %v1177, 4
      %v1179 = vmax.f32 %v1177, %v1178
      %v1180 = vrot.slane %v1179, 2
      %v1181 = vmax.f32 %v1179, %v1180
      %v1182 = vrot.slane %v1181, 1
      %v1183 = vmax.f32 %v1181, %v1182
      %v1184 = vsel %vm275, %v968, -inf
      %v1185 = vrot.slane %v1184, 4
      %v1186 = vmax.f32 %v1184, %v1185
      %v1187 = vrot.slane %v1186, 2
      %v1188 = vmax.f32 %v1186, %v1187
      %v1189 = vrot.slane %v1188, 1
      %v1190 = vmax.f32 %v1188, %v1189
      %v1191 = vsel %vm275, %v973, -inf
      %v1192 = vrot.slane %v1191, 4
      %v1193 = vmax.f32 %v1191, %v1192
      %v1194 = vrot.slane %v1193, 2
      %v1195 = vmax.f32 %v1193, %v1194
      %v1196 = vrot.slane %v1195, 1
      %v1197 = vmax.f32 %v1195, %v1196
      %v1198 = vsel %vm275, %v978, -inf
      %v1199 = vrot.slane %v1198, 4
      %v1200 = vmax.f32 %v1198, %v1199
      %v1201 = vrot.slane %v1200, 2
      %v1202 = vmax.f32 %v1200, %v1201
      %v1203 = vrot.slane %v1202, 1
      %v1204 = vmax.f32 %v1202, %v1203
      %v1205 = vsub.f32 %v823, %v987
      %v1206 = vsub.f32 %v828, %v994
      %v1207 = vsub.f32 %v833, %v1001
      %v1208 = vsub.f32 %v838, %v1008
      %v1209 = vsub.f32 %v843, %v1015
      %v1210 = vsub.f32 %v848, %v1022
      %v1211 = vsub.f32 %v853, %v1029
      %v1212 = vsub.f32 %v858, %v1036
      %v1213 = vsub.f32 %v863, %v1043
      %v1214 = vsub.f32 %v868, %v1050
      %v1215 = vsub.f32 %v873, %v1057
      %v1216 = vsub.f32 %v878, %v1064
      %v1217 = vsub.f32 %v883, %v1071
      %v1218 = vsub.f32 %v888, %v1078
      %v1219 = vsub.f32 %v893, %v1085
      %v1220 = vsub.f32 %v898, %v1092
      %v1221 = vsub.f32 %v903, %v1099
      %v1222 = vsub.f32 %v908, %v1106
      %v1223 = vsub.f32 %v913, %v1113
      %v1224 = vsub.f32 %v918, %v1120
      %v1225 = vsub.f32 %v923, %v1127
      %v1226 = vsub.f32 %v928, %v1134
      %v1227 = vsub.f32 %v933, %v1141
      %v1228 = vsub.f32 %v938, %v1148
      %v1229 = vsub.f32 %v943, %v1155
      %v1230 = vsub.f32 %v948, %v1162
      %v1231 = vsub.f32 %v953, %v1169
      %v1232 = vsub.f32 %v958, %v1176
      %v1233 = vsub.f32 %v963, %v1183
      %v1234 = vsub.f32 %v968, %v1190
      %v1235 = vsub.f32 %v973, %v1197
      %v1236 = vsub.f32 %v978, %v1204
      %v1237 = vmul.f32 %v1205, 1.442695
      %v1238 = vpow.pop %v1237
      %v1239 = vmul.f32 %v1206, 1.442695
      %v1240 = vpow.pop %v1239
      %v1241 = vmul.f32 %v1207, 1.442695
      %v1242 = vpow.pop %v1241
      %v1243 = vmul.f32 %v1208, 1.442695
      %v1244 = vpow.pop %v1243
      %v1245 = vmul.f32 %v1209, 1.442695
      %v1246 = vpow.pop %v1245
      %v1247 = vmul.f32 %v1210, 1.442695
      %v1248 = vpow.pop %v1247
      %v1249 = vmul.f32 %v1211, 1.442695
      %v1250 = vpow.pop %v1249
      %v1251 = vmul.f32 %v1212, 1.442695
      %v1252 = vpow.pop %v1251
      %v1253 = vmul.f32 %v1213, 1.442695
      %v1254 = vpow.pop %v1253
      %v1255 = vmul.f32 %v1214, 1.442695
      %v1256 = vpow.pop %v1255
      %v1257 = vmul.f32 %v1215, 1.442695
      %v1258 = vpow.pop %v1257
      %v1259 = vmul.f32 %v1216, 1.442695
      %v1260 = vpow.pop %v1259
      %v1261 = vmul.f32 %v1217, 1.442695
      %v1262 = vpow.pop %v1261
      %v1263 = vmul.f32 %v1218, 1.442695
      %v1264 = vpow.pop %v1263
      %v1265 = vmul.f32 %v1219, 1.442695
      %v1266 = vpow.pop %v1265
      %v1267 = vmul.f32 %v1220, 1.442695
      %v1268 = vpow.pop %v1267
      %v1269 = vmul.f32 %v1221, 1.442695
      %v1270 = vpow.pop %v1269
      %v1271 = vmul.f32 %v1222, 1.442695
      %v1272 = vpow.pop %v1271
      %v1273 = vmul.f32 %v1223, 1.442695
      %v1274 = vpow.pop %v1273
      %v1275 = vmul.f32 %v1224, 1.442695
      %v1276 = vpow.pop %v1275
      %v1277 = vmul.f32 %v1225, 1.442695
      %v1278 = vpow.pop %v1277
      %v1279 = vmul.f32 %v1226, 1.442695
      %v1280 = vpow.pop %v1279
      %v1281 = vmul.f32 %v1227, 1.442695
      %v1282 = vpow.pop %v1281
      %v1283 = vmul.f32 %v1228, 1.442695
      %v1284 = vpow.pop %v1283
      %v1285 = vmul.f32 %v1229, 1.442695
      %v1286 = vpow.pop %v1285
      %v1287 = vmul.f32 %v1230, 1.442695
      %v1288 = vpow.pop %v1287
      %v1289 = vmul.f32 %v1231, 1.442695
      %v1290 = vpow.pop %v1289
      %v1291 = vmul.f32 %v1232, 1.442695
      %v1292 = vpow.pop %v1291
      %v1293 = vmul.f32 %v1233, 1.442695
      %v1294 = vpow.pop %v1293
      %v1295 = vmul.f32 %v1234, 1.442695
      %v1296 = vpow.pop %v1295
      %v1297 = vmul.f32 %v1235, 1.442695
      %v1298 = vpow.pop %v1297
      %v1299 = vmul.f32 %v1236, 1.442695
      %v1300 = vpow.pop %v1299
      %v1301 = vsel %vm275, %v1238, 0.0
      %v1302 = vrot.slane %v1301, 4
      %v1303 = vadd.f32 %v1301, %v1302
      %v1304 = vrot.slane %v1303, 2
      %v1305 = vadd.f32 %v1303, %v1304
      %v1306 = vrot.slane %v1305, 1
      %v1307 = vadd.f32 %v1305, %v1306
      %v1308 = vsel %vm275, %v1240, 0.0
      %v1309 = vrot.slane %v1308, 4
      %v1310 = vadd.f32 %v1308, %v1309
      %v1311 = vrot.slane %v1310, 2
      %v1312 = vadd.f32 %v1310, %v1311
      %v1313 = vrot.slane %v1312, 1
      %v1314 = vadd.f32 %v1312, %v1313
      %v1315 = vsel %vm275, %v1242, 0.0
      %v1316 = vrot.slane %v1315, 4
      %v1317 = vadd.f32 %v1315, %v1316
      %v1318 = vrot.slane %v1317, 2
      %v1319 = vadd.f32 %v1317, %v1318
      %v1320 = vrot.slane %v1319, 1
      %v1321 = vadd.f32 %v1319, %v1320
      %v1322 = vsel %vm275, %v1244, 0.0
      %v1323 = vrot.slane %v1322, 4
      %v1324 = vadd.f32 %v1322, %v1323
      %v1325 = vrot.slane %v1324, 2
      %v1326 = vadd.f32 %v1324, %v1325
      %v1327 = vrot.slane %v1326, 1
      %v1328 = vadd.f32 %v1326, %v1327
      %v1329 = vsel %vm275, %v1246, 0.0
      %v1330 = vrot.slane %v1329, 4
      %v1331 = vadd.f32 %v1329, %v1330
      %v1332 = vrot.slane %v1331, 2
      %v1333 = vadd.f32 %v1331, %v1332
      %v1334 = vrot.slane %v1333, 1
      %v1335 = vadd.f32 %v1333, %v1334
      %v1336 = vsel %vm275, %v1248, 0.0
      %v1337 = vrot.slane %v1336, 4
      %v1338 = vadd.f32 %v1336, %v1337
      %v1339 = vrot.slane %v1338, 2
      %v1340 = vadd.f32 %v1338, %v1339
      %v1341 = vrot.slane %v1340, 1
      %v1342 = vadd.f32 %v1340, %v1341
      %v1343 = vsel %vm275, %v1250, 0.0
      %v1344 = vrot.slane %v1343, 4
      %v1345 = vadd.f32 %v1343, %v1344
      %v1346 = vrot.slane %v1345, 2
      %v1347 = vadd.f32 %v1345, %v1346
      %v1348 = vrot.slane %v1347, 1
      %v1349 = vadd.f32 %v1347, %v1348
      %v1350 = vsel %vm275, %v1252, 0.0
      %v1351 = vrot.slane %v1350, 4
      %v1352 = vadd.f32 %v1350, %v1351
      %v1353 = vrot.slane %v1352, 2
      %v1354 = vadd.f32 %v1352, %v1353
      %v1355 = vrot.slane %v1354, 1
      %v1356 = vadd.f32 %v1354, %v1355
      %v1357 = vsel %vm275, %v1254, 0.0
      %v1358 = vrot.slane %v1357, 4
      %v1359 = vadd.f32 %v1357, %v1358
      %v1360 = vrot.slane %v1359, 2
      %v1361 = vadd.f32 %v1359, %v1360
      %v1362 = vrot.slane %v1361, 1
      %v1363 = vadd.f32 %v1361, %v1362
      %v1364 = vsel %vm275, %v1256, 0.0
      %v1365 = vrot.slane %v1364, 4
      %v1366 = vadd.f32 %v1364, %v1365
      %v1367 = vrot.slane %v1366, 2
      %v1368 = vadd.f32 %v1366, %v1367
      %v1369 = vrot.slane %v1368, 1
      %v1370 = vadd.f32 %v1368, %v1369
      %v1371 = vsel %vm275, %v1258, 0.0
      %v1372 = vrot.slane %v1371, 4
      %v1373 = vadd.f32 %v1371, %v1372
      %v1374 = vrot.slane %v1373, 2
      %v1375 = vadd.f32 %v1373, %v1374
      %v1376 = vrot.slane %v1375, 1
      %v1377 = vadd.f32 %v1375, %v1376
      %v1378 = vsel %vm275, %v1260, 0.0
      %v1379 = vrot.slane %v1378, 4
      %v1380 = vadd.f32 %v1378, %v1379
      %v1381 = vrot.slane %v1380, 2
      %v1382 = vadd.f32 %v1380, %v1381
      %v1383 = vrot.slane %v1382, 1
      %v1384 = vadd.f32 %v1382, %v1383
      %v1385 = vsel %vm275, %v1262, 0.0
      %v1386 = vrot.slane %v1385, 4
      %v1387 = vadd.f32 %v1385, %v1386
      %v1388 = vrot.slane %v1387, 2
      %v1389 = vadd.f32 %v1387, %v1388
      %v1390 = vrot.slane %v1389, 1
      %v1391 = vadd.f32 %v1389, %v1390
      %v1392 = vsel %vm275, %v1264, 0.0
      %v1393 = vrot.slane %v1392, 4
      %v1394 = vadd.f32 %v1392, %v1393
      %v1395 = vrot.slane %v1394, 2
      %v1396 = vadd.f32 %v1394, %v1395
      %v1397 = vrot.slane %v1396, 1
      %v1398 = vadd.f32 %v1396, %v1397
      %v1399 = vsel %vm275, %v1266, 0.0
      %v1400 = vrot.slane %v1399, 4
      %v1401 = vadd.f32 %v1399, %v1400
      %v1402 = vrot.slane %v1401, 2
      %v1403 = vadd.f32 %v1401, %v1402
      %v1404 = vrot.slane %v1403, 1
      %v1405 = vadd.f32 %v1403, %v1404
      %v1406 = vsel %vm275, %v1268, 0.0
      %v1407 = vrot.slane %v1406, 4
      %v1408 = vadd.f32 %v1406, %v1407
      %v1409 = vrot.slane %v1408, 2
      %v1410 = vadd.f32 %v1408, %v1409
      %v1411 = vrot.slane %v1410, 1
      %v1412 = vadd.f32 %v1410, %v1411
      %v1413 = vsel %vm275, %v1270, 0.0
      %v1414 = vrot.slane %v1413, 4
      %v1415 = vadd.f32 %v1413, %v1414
      %v1416 = vrot.slane %v1415, 2
      %v1417 = vadd.f32 %v1415, %v1416
      %v1418 = vrot.slane %v1417, 1
      %v1419 = vadd.f32 %v1417, %v1418
      %v1420 = vsel %vm275, %v1272, 0.0
      %v1421 = vrot.slane %v1420, 4
      %v1422 = vadd.f32 %v1420, %v1421
      %v1423 = vrot.slane %v1422, 2
      %v1424 = vadd.f32 %v1422, %v1423
      %v1425 = vrot.slane %v1424, 1
      %v1426 = vadd.f32 %v1424, %v1425
      %v1427 = vsel %vm275, %v1274, 0.0
      %v1428 = vrot.slane %v1427, 4
      %v1429 = vadd.f32 %v1427, %v1428
      %v1430 = vrot.slane %v1429, 2
      %v1431 = vadd.f32 %v1429, %v1430
      %v1432 = vrot.slane %v1431, 1
      %v1433 = vadd.f32 %v1431, %v1432
      %v1434 = vsel %vm275, %v1276, 0.0
      %v1435 = vrot.slane %v1434, 4
      %v1436 = vadd.f32 %v1434, %v1435
      %v1437 = vrot.slane %v1436, 2
      %v1438 = vadd.f32 %v1436, %v1437
      %v1439 = vrot.slane %v1438, 1
      %v1440 = vadd.f32 %v1438, %v1439
      %v1441 = vsel %vm275, %v1278, 0.0
      %v1442 = vrot.slane %v1441, 4
      %v1443 = vadd.f32 %v1441, %v1442
      %v1444 = vrot.slane %v1443, 2
      %v1445 = vadd.f32 %v1443, %v1444
      %v1446 = vrot.slane %v1445, 1
      %v1447 = vadd.f32 %v1445, %v1446
      %v1448 = vsel %vm275, %v1280, 0.0
      %v1449 = vrot.slane %v1448, 4
      %v1450 = vadd.f32 %v1448, %v1449
      %v1451 = vrot.slane %v1450, 2
      %v1452 = vadd.f32 %v1450, %v1451
      %v1453 = vrot.slane %v1452, 1
      %v1454 = vadd.f32 %v1452, %v1453
      %v1455 = vsel %vm275, %v1282, 0.0
      %v1456 = vrot.slane %v1455, 4
      %v1457 = vadd.f32 %v1455, %v1456
      %v1458 = vrot.slane %v1457, 2
      %v1459 = vadd.f32 %v1457, %v1458
      %v1460 = vrot.slane %v1459, 1
      %v1461 = vadd.f32 %v1459, %v1460
      %v1462 = vsel %vm275, %v1284, 0.0
      %v1463 = vrot.slane %v1462, 4
      %v1464 = vadd.f32 %v1462, %v1463
      %v1465 = vrot.slane %v1464, 2
      %v1466 = vadd.f32 %v1464, %v1465
      %v1467 = vrot.slane %v1466, 1
      %v1468 = vadd.f32 %v1466, %v1467
      %v1469 = vsel %vm275, %v1286, 0.0
      %v1470 = vrot.slane %v1469, 4
      %v1471 = vadd.f32 %v1469, %v1470
      %v1472 = vrot.slane %v1471, 2
      %v1473 = vadd.f32 %v1471, %v1472
      %v1474 = vrot.slane %v1473, 1
      %v1475 = vadd.f32 %v1473, %v1474
      %v1476 = vsel %vm275, %v1288, 0.0
      %v1477 = vrot.slane %v1476, 4
      %v1478 = vadd.f32 %v1476, %v1477
      %v1479 = vrot.slane %v1478, 2
      %v1480 = vadd.f32 %v1478, %v1479
      %v1481 = vrot.slane %v1480, 1
      %v1482 = vadd.f32 %v1480, %v1481
      %v1483 = vsel %vm275, %v1290, 0.0
      %v1484 = vrot.slane %v1483, 4
      %v1485 = vadd.f32 %v1483, %v1484
      %v1486 = vrot.slane %v1485, 2
      %v1487 = vadd.f32 %v1485, %v1486
      %v1488 = vrot.slane %v1487, 1
      %v1489 = vadd.f32 %v1487, %v1488
      %v1490 = vsel %vm275, %v1292, 0.0
      %v1491 = vrot.slane %v1490, 4
      %v1492 = vadd.f32 %v1490, %v1491
      %v1493 = vrot.slane %v1492, 2
      %v1494 = vadd.f32 %v1492, %v1493
      %v1495 = vrot.slane %v1494, 1
      %v1496 = vadd.f32 %v1494, %v1495
      %v1497 = vsel %vm275, %v1294, 0.0
      %v1498 = vrot.slane %v1497, 4
      %v1499 = vadd.f32 %v1497, %v1498
      %v1500 = vrot.slane %v1499, 2
      %v1501 = vadd.f32 %v1499, %v1500
      %v1502 = vrot.slane %v1501, 1
      %v1503 = vadd.f32 %v1501, %v1502
      %v1504 = vsel %vm275, %v1296, 0.0
      %v1505 = vrot.slane %v1504, 4
      %v1506 = vadd.f32 %v1504, %v1505
      %v1507 = vrot.slane %v1506, 2
      %v1508 = vadd.f32 %v1506, %v1507
      %v1509 = vrot.slane %v1508, 1
      %v1510 = vadd.f32 %v1508, %v1509
      %v1511 = vsel %vm275, %v1298, 0.0
      %v1512 = vrot.slane %v1511, 4
      %v1513 = vadd.f32 %v1511, %v1512
      %v1514 = vrot.slane %v1513, 2
      %v1515 = vadd.f32 %v1513, %v1514
      %v1516 = vrot.slane %v1515, 1
      %v1517 = vadd.f32 %v1515, %v1516
      %v1518 = vsel %vm275, %v1300, 0.0
      %v1519 = vrot.slane %v1518, 4
      %v1520 = vadd.f32 %v1518, %v1519
      %v1521 = vrot.slane %v1520, 2
      %v1522 = vadd.f32 %v1520, %v1521
      %v1523 = vrot.slane %v1522, 1
      %v1524 = vadd.f32 %v1522, %v1523
      %v1525 = vmul.f32 %v1238, %v228
      %v1526 = vmul.f32 %v1240, %v229
      %v1527 = vmul.f32 %v1242, %v230
      %v1528 = vmul.f32 %v1244, %v231
      %v1529 = vmul.f32 %v1246, %v232
      %v1530 = vmul.f32 %v1248, %v233
      %v1531 = vmul.f32 %v1250, %v234
      %v1532 = vmul.f32 %v1252, %v235
      %v1533 = vmul.f32 %v1254, %v236
      %v1534 = vmul.f32 %v1256, %v237
      %v1535 = vmul.f32 %v1258, %v238
      %v1536 = vmul.f32 %v1260, %v239
      %v1537 = vmul.f32 %v1262, %v240
      %v1538 = vmul.f32 %v1264, %v241
      %v1539 = vmul.f32 %v1266, %v242
      %v1540 = vmul.f32 %v1268, %v243
      %v1541 = vmul.f32 %v1270, %v244
      %v1542 = vmul.f32 %v1272, %v245
      %v1543 = vmul.f32 %v1274, %v246
      %v1544 = vmul.f32 %v1276, %v247
      %v1545 = vmul.f32 %v1278, %v248
      %v1546 = vmul.f32 %v1280, %v249
      %v1547 = vmul.f32 %v1282, %v250
      %v1548 = vmul.f32 %v1284, %v251
      %v1549 = vmul.f32 %v1286, %v252
      %v1550 = vmul.f32 %v1288, %v253
      %v1551 = vmul.f32 %v1290, %v254
      %v1552 = vmul.f32 %v1292, %v255
      %v1553 = vmul.f32 %v1294, %v256
      %v1554 = vmul.f32 %v1296, %v257
      %v1555 = vmul.f32 %v1298, %v258
      %v1556 = vmul.f32 %v1300, %v259
      %v1557 = vsel %vm275, %v1525, 0.0
      %v1558 = vrot.slane %v1557, 4
      %v1559 = vadd.f32 %v1557, %v1558
      %v1560 = vrot.slane %v1559, 2
      %v1561 = vadd.f32 %v1559, %v1560
      %v1562 = vrot.slane %v1561, 1
      %v1563 = vadd.f32 %v1561, %v1562
      %v1564 = vsel %vm275, %v1526, 0.0
      %v1565 = vrot.slane %v1564, 4
      %v1566 = vadd.f32 %v1564, %v1565
      %v1567 = vrot.slane %v1566, 2
      %v1568 = vadd.f32 %v1566, %v1567
      %v1569 = vrot.slane %v1568, 1
      %v1570 = vadd.f32 %v1568, %v1569
      %v1571 = vsel %vm275, %v1527, 0.0
      %v1572 = vrot.slane %v1571, 4
      %v1573 = vadd.f32 %v1571, %v1572
      %v1574 = vrot.slane %v1573, 2
      %v1575 = vadd.f32 %v1573, %v1574
      %v1576 = vrot.slane %v1575, 1
      %v1577 = vadd.f32 %v1575, %v1576
      %v1578 = vsel %vm275, %v1528, 0.0
      %v1579 = vrot.slane %v1578, 4
      %v1580 = vadd.f32 %v1578, %v1579
      %v1581 = vrot.slane %v1580, 2
      %v1582 = vadd.f32 %v1580, %v1581
      %v1583 = vrot.slane %v1582, 1
      %v1584 = vadd.f32 %v1582, %v1583
      %v1585 = vsel %vm275, %v1529, 0.0
      %v1586 = vrot.slane %v1585, 4
      %v1587 = vadd.f32 %v1585, %v1586
      %v1588 = vrot.slane %v1587, 2
      %v1589 = vadd.f32 %v1587, %v1588
      %v1590 = vrot.slane %v1589, 1
      %v1591 = vadd.f32 %v1589, %v1590
      %v1592 = vsel %vm275, %v1530, 0.0
      %v1593 = vrot.slane %v1592, 4
      %v1594 = vadd.f32 %v1592, %v1593
      %v1595 = vrot.slane %v1594, 2
      %v1596 = vadd.f32 %v1594, %v1595
      %v1597 = vrot.slane %v1596, 1
      %v1598 = vadd.f32 %v1596, %v1597
      %v1599 = vsel %vm275, %v1531, 0.0
      %v1600 = vrot.slane %v1599, 4
      %v1601 = vadd.f32 %v1599, %v1600
      %v1602 = vrot.slane %v1601, 2
      %v1603 = vadd.f32 %v1601, %v1602
      %v1604 = vrot.slane %v1603, 1
      %v1605 = vadd.f32 %v1603, %v1604
      %v1606 = vsel %vm275, %v1532, 0.0
      %v1607 = vrot.slane %v1606, 4
      %v1608 = vadd.f32 %v1606, %v1607
      %v1609 = vrot.slane %v1608, 2
      %v1610 = vadd.f32 %v1608, %v1609
      %v1611 = vrot.slane %v1610, 1
      %v1612 = vadd.f32 %v1610, %v1611
      %v1613 = vsel %vm275, %v1533, 0.0
      %v1614 = vrot.slane %v1613, 4
      %v1615 = vadd.f32 %v1613, %v1614
      %v1616 = vrot.slane %v1615, 2
      %v1617 = vadd.f32 %v1615, %v1616
      %v1618 = vrot.slane %v1617, 1
      %v1619 = vadd.f32 %v1617, %v1618
      %v1620 = vsel %vm275, %v1534, 0.0
      %v1621 = vrot.slane %v1620, 4
      %v1622 = vadd.f32 %v1620, %v1621
      %v1623 = vrot.slane %v1622, 2
      %v1624 = vadd.f32 %v1622, %v1623
      %v1625 = vrot.slane %v1624, 1
      %v1626 = vadd.f32 %v1624, %v1625
      %v1627 = vsel %vm275, %v1535, 0.0
      %v1628 = vrot.slane %v1627, 4
      %v1629 = vadd.f32 %v1627, %v1628
      %v1630 = vrot.slane %v1629, 2
      %v1631 = vadd.f32 %v1629, %v1630
      %v1632 = vrot.slane %v1631, 1
      %v1633 = vadd.f32 %v1631, %v1632
      %v1634 = vsel %vm275, %v1536, 0.0
      %v1635 = vrot.slane %v1634, 4
      %v1636 = vadd.f32 %v1634, %v1635
      %v1637 = vrot.slane %v1636, 2
      %v1638 = vadd.f32 %v1636, %v1637
      %v1639 = vrot.slane %v1638, 1
      %v1640 = vadd.f32 %v1638, %v1639
      %v1641 = vsel %vm275, %v1537, 0.0
      %v1642 = vrot.slane %v1641, 4
      %v1643 = vadd.f32 %v1641, %v1642
      %v1644 = vrot.slane %v1643, 2
      %v1645 = vadd.f32 %v1643, %v1644
      %v1646 = vrot.slane %v1645, 1
      %v1647 = vadd.f32 %v1645, %v1646
      %v1648 = vsel %vm275, %v1538, 0.0
      %v1649 = vrot.slane %v1648, 4
      %v1650 = vadd.f32 %v1648, %v1649
      %v1651 = vrot.slane %v1650, 2
      %v1652 = vadd.f32 %v1650, %v1651
      %v1653 = vrot.slane %v1652, 1
      %v1654 = vadd.f32 %v1652, %v1653
      %v1655 = vsel %vm275, %v1539, 0.0
      %v1656 = vrot.slane %v1655, 4
      %v1657 = vadd.f32 %v1655, %v1656
      %v1658 = vrot.slane %v1657, 2
      %v1659 = vadd.f32 %v1657, %v1658
      %v1660 = vrot.slane %v1659, 1
      %v1661 = vadd.f32 %v1659, %v1660
      %v1662 = vsel %vm275, %v1540, 0.0
      %v1663 = vrot.slane %v1662, 4
      %v1664 = vadd.f32 %v1662, %v1663
      %v1665 = vrot.slane %v1664, 2
      %v1666 = vadd.f32 %v1664, %v1665
      %v1667 = vrot.slane %v1666, 1
      %v1668 = vadd.f32 %v1666, %v1667
      %v1669 = vsel %vm275, %v1541, 0.0
      %v1670 = vrot.slane %v1669, 4
      %v1671 = vadd.f32 %v1669, %v1670
      %v1672 = vrot.slane %v1671, 2
      %v1673 = vadd.f32 %v1671, %v1672
      %v1674 = vrot.slane %v1673, 1
      %v1675 = vadd.f32 %v1673, %v1674
      %v1676 = vsel %vm275, %v1542, 0.0
      %v1677 = vrot.slane %v1676, 4
      %v1678 = vadd.f32 %v1676, %v1677
      %v1679 = vrot.slane %v1678, 2
      %v1680 = vadd.f32 %v1678, %v1679
      %v1681 = vrot.slane %v1680, 1
      %v1682 = vadd.f32 %v1680, %v1681
      %v1683 = vsel %vm275, %v1543, 0.0
      %v1684 = vrot.slane %v1683, 4
      %v1685 = vadd.f32 %v1683, %v1684
      %v1686 = vrot.slane %v1685, 2
      %v1687 = vadd.f32 %v1685, %v1686
      %v1688 = vrot.slane %v1687, 1
      %v1689 = vadd.f32 %v1687, %v1688
      %v1690 = vsel %vm275, %v1544, 0.0
      %v1691 = vrot.slane %v1690, 4
      %v1692 = vadd.f32 %v1690, %v1691
      %v1693 = vrot.slane %v1692, 2
      %v1694 = vadd.f32 %v1692, %v1693
      %v1695 = vrot.slane %v1694, 1
      %v1696 = vadd.f32 %v1694, %v1695
      %v1697 = vsel %vm275, %v1545, 0.0
      %v1698 = vrot.slane %v1697, 4
      %v1699 = vadd.f32 %v1697, %v1698
      %v1700 = vrot.slane %v1699, 2
      %v1701 = vadd.f32 %v1699, %v1700
      %v1702 = vrot.slane %v1701, 1
      %v1703 = vadd.f32 %v1701, %v1702
      %v1704 = vsel %vm275, %v1546, 0.0
      %v1705 = vrot.slane %v1704, 4
      %v1706 = vadd.f32 %v1704, %v1705
      %v1707 = vrot.slane %v1706, 2
      %v1708 = vadd.f32 %v1706, %v1707
      %v1709 = vrot.slane %v1708, 1
      %v1710 = vadd.f32 %v1708, %v1709
      %v1711 = vsel %vm275, %v1547, 0.0
      %v1712 = vrot.slane %v1711, 4
      %v1713 = vadd.f32 %v1711, %v1712
      %v1714 = vrot.slane %v1713, 2
      %v1715 = vadd.f32 %v1713, %v1714
      %v1716 = vrot.slane %v1715, 1
      %v1717 = vadd.f32 %v1715, %v1716
      %v1718 = vsel %vm275, %v1548, 0.0
      %v1719 = vrot.slane %v1718, 4
      %v1720 = vadd.f32 %v1718, %v1719
      %v1721 = vrot.slane %v1720, 2
      %v1722 = vadd.f32 %v1720, %v1721
      %v1723 = vrot.slane %v1722, 1
      %v1724 = vadd.f32 %v1722, %v1723
      %v1725 = vsel %vm275, %v1549, 0.0
      %v1726 = vrot.slane %v1725, 4
      %v1727 = vadd.f32 %v1725, %v1726
      %v1728 = vrot.slane %v1727, 2
      %v1729 = vadd.f32 %v1727, %v1728
      %v1730 = vrot.slane %v1729, 1
      %v1731 = vadd.f32 %v1729, %v1730
      %v1732 = vsel %vm275, %v1550, 0.0
      %v1733 = vrot.slane %v1732, 4
      %v1734 = vadd.f32 %v1732, %v1733
      %v1735 = vrot.slane %v1734, 2
      %v1736 = vadd.f32 %v1734, %v1735
      %v1737 = vrot.slane %v1736, 1
      %v1738 = vadd.f32 %v1736, %v1737
      %v1739 = vsel %vm275, %v1551, 0.0
      %v1740 = vrot.slane %v1739, 4
      %v1741 = vadd.f32 %v1739, %v1740
      %v1742 = vrot.slane %v1741, 2
      %v1743 = vadd.f32 %v1741, %v1742
      %v1744 = vrot.slane %v1743, 1
      %v1745 = vadd.f32 %v1743, %v1744
      %v1746 = vsel %vm275, %v1552, 0.0
      %v1747 = vrot.slane %v1746, 4
      %v1748 = vadd.f32 %v1746, %v1747
      %v1749 = vrot.slane %v1748, 2
      %v1750 = vadd.f32 %v1748, %v1749
      %v1751 = vrot.slane %v1750, 1
      %v1752 = vadd.f32 %v1750, %v1751
      %v1753 = vsel %vm275, %v1553, 0.0
      %v1754 = vrot.slane %v1753, 4
      %v1755 = vadd.f32 %v1753, %v1754
      %v1756 = vrot.slane %v1755, 2
      %v1757 = vadd.f32 %v1755, %v1756
      %v1758 = vrot.slane %v1757, 1
      %v1759 = vadd.f32 %v1757, %v1758
      %v1760 = vsel %vm275, %v1554, 0.0
      %v1761 = vrot.slane %v1760, 4
      %v1762 = vadd.f32 %v1760, %v1761
      %v1763 = vrot.slane %v1762, 2
      %v1764 = vadd.f32 %v1762, %v1763
      %v1765 = vrot.slane %v1764, 1
      %v1766 = vadd.f32 %v1764, %v1765
      %v1767 = vsel %vm275, %v1555, 0.0
      %v1768 = vrot.slane %v1767, 4
      %v1769 = vadd.f32 %v1767, %v1768
      %v1770 = vrot.slane %v1769, 2
      %v1771 = vadd.f32 %v1769, %v1770
      %v1772 = vrot.slane %v1771, 1
      %v1773 = vadd.f32 %v1771, %v1772
      %v1774 = vsel %vm275, %v1556, 0.0
      %v1775 = vrot.slane %v1774, 4
      %v1776 = vadd.f32 %v1774, %v1775
      %v1777 = vrot.slane %v1776, 2
      %v1778 = vadd.f32 %v1776, %v1777
      %v1779 = vrot.slane %v1778, 1
      %v1780 = vadd.f32 %v1778, %v1779
      %v1781 = vrcp.pop %v1307
      %v1782 = vrcp.pop %v1314
      %v1783 = vrcp.pop %v1321
      %v1784 = vrcp.pop %v1328
      %v1785 = vrcp.pop %v1335
      %v1786 = vrcp.pop %v1342
      %v1787 = vrcp.pop %v1349
      %v1788 = vrcp.pop %v1356
      %v1789 = vrcp.pop %v1363
      %v1790 = vrcp.pop %v1370
      %v1791 = vrcp.pop %v1377
      %v1792 = vrcp.pop %v1384
      %v1793 = vrcp.pop %v1391
      %v1794 = vrcp.pop %v1398
      %v1795 = vrcp.pop %v1405
      %v1796 = vrcp.pop %v1412
      %v1797 = vrcp.pop %v1419
      %v1798 = vrcp.pop %v1426
      %v1799 = vrcp.pop %v1433
      %v1800 = vrcp.pop %v1440
      %v1801 = vrcp.pop %v1447
      %v1802 = vrcp.pop %v1454
      %v1803 = vrcp.pop %v1461
      %v1804 = vrcp.pop %v1468
      %v1805 = vrcp.pop %v1475
      %v1806 = vrcp.pop %v1482
      %v1807 = vrcp.pop %v1489
      %v1808 = vrcp.pop %v1496
      %v1809 = vrcp.pop %v1503
      %v1810 = vrcp.pop %v1510
      %v1811 = vrcp.pop %v1517
      %v1812 = vrcp.pop %v1524
      %v1813 = vmul.f32 %v1563, %v1781
      %v1814 = vmul.f32 %v1570, %v1782
      %v1815 = vmul.f32 %v1577, %v1783
      %v1816 = vmul.f32 %v1584, %v1784
      %v1817 = vmul.f32 %v1591, %v1785
      %v1818 = vmul.f32 %v1598, %v1786
      %v1819 = vmul.f32 %v1605, %v1787
      %v1820 = vmul.f32 %v1612, %v1788
      %v1821 = vmul.f32 %v1619, %v1789
      %v1822 = vmul.f32 %v1626, %v1790
      %v1823 = vmul.f32 %v1633, %v1791
      %v1824 = vmul.f32 %v1640, %v1792
      %v1825 = vmul.f32 %v1647, %v1793
      %v1826 = vmul.f32 %v1654, %v1794
      %v1827 = vmul.f32 %v1661, %v1795
      %v1828 = vmul.f32 %v1668, %v1796
      %v1829 = vmul.f32 %v1675, %v1797
      %v1830 = vmul.f32 %v1682, %v1798
      %v1831 = vmul.f32 %v1689, %v1799
      %v1832 = vmul.f32 %v1696, %v1800
      %v1833 = vmul.f32 %v1703, %v1801
      %v1834 = vmul.f32 %v1710, %v1802
      %v1835 = vmul.f32 %v1717, %v1803
      %v1836 = vmul.f32 %v1724, %v1804
      %v1837 = vmul.f32 %v1731, %v1805
      %v1838 = vmul.f32 %v1738, %v1806
      %v1839 = vmul.f32 %v1745, %v1807
      %v1840 = vmul.f32 %v1752, %v1808
      %v1841 = vmul.f32 %v1759, %v1809
      %v1842 = vmul.f32 %v1766, %v1810
      %v1843 = vmul.f32 %v1773, %v1811
      %v1844 = vmul.f32 %v1780, %v1812
      %vm1877 = vcmask 1041409
      %v1878 = vsel %vm1877, %v1814, %v1813
      %vm1879 = vcmask 1042434
      %v1880 = vsel %vm1879, %v1815, %v1878
      %vm1881 = vcmask 1043459
      %v1882 = vsel %vm1881, %v1816, %v1880
      %vm1883 = vcmask 1044484
      %v1884 = vsel %vm1883, %v1817, %v1882
      %vm1885 = vcmask 1045509
      %v1886 = vsel %vm1885, %v1818, %v1884
      %vm1887 = vcmask 1046534
      %v1888 = vsel %vm1887, %v1819, %v1886
      %vm1889 = vcmask 1047559
      %v1890 = vsel %vm1889, %v1820, %v1888
      %v1891 = vsel %vm1877, %v1822, %v1821
      %v1892 = vsel %vm1879, %v1823, %v1891
      %v1893 = vsel %vm1881, %v1824, %v1892
      %v1894 = vsel %vm1883, %v1825, %v1893
      %v1895 = vsel %vm1885, %v1826, %v1894
      %v1896 = vsel %vm1887, %v1827, %v1895
      %v1897 = vsel %vm1889, %v1828, %v1896
      %v1898 = vsel %vm1877, %v1830, %v1829
      %v1899 = vsel %vm1879, %v1831, %v1898
      %v1900 = vsel %vm1881, %v1832, %v1899
      %v1901 = vsel %vm1883, %v1833, %v1900
      %v1902 = vsel %vm1885, %v1834, %v1901
      %v1903 = vsel %vm1887, %v1835, %v1902
      %v1904 = vsel %vm1889, %v1836, %v1903
      %v1905 = vsel %vm1877, %v1838, %v1837
      %v1906 = vsel %vm1879, %v1839, %v1905
      %v1907 = vsel %vm1881, %v1840, %v1906
      %v1908 = vsel %vm1883, %v1841, %v1907
      %v1909 = vsel %vm1885, %v1842, %v1908
      %v1910 = vsel %vm1887, %v1843, %v1909
      %v1911 = vsel %vm1889, %v1844, %v1910
      %1916 = vst.msk [vmem:[%s226] sm:$0xff] %vm275, %v1890
      %1917 = vst.msk [vmem:[%s226 + $0x8] sm:$0xff] %vm275, %v1897
      %1918 = vst.msk [vmem:[%s226 + $0x10] sm:$0xff] %vm275, %v1904
      %1919 = vst.msk [vmem:[%s226 + $0x18] sm:$0xff] %vm275, %v1911
      %s1920 = smul.u32 4, %s16
      %p1921 = scmp.lt.s32.totalorder %s1920, 15
      %s1922 = scalar_select %p1921, %s1920, 15
      %s1923 = smul.addr %s1922, 8
      %s1924 = scalar_lea.vmem %s5, %s1923
      // Predicated region
      $region41: #{tpu_custom_call.1} parent=39 // pred_check
        %p1925 = pneg %p144
      $region42: #{tpu_custom_call.1} parent=39 // pred_check_branch
        %1927 = sbr.rel (%p1925) target = $region44
      $region43: #{tpu_custom_call.1} parent=39 // pred_region
        %s1928 = smul.u32 4, %s16
      $region44: #{tpu_custom_call.1} parent=39 // pred_fallthru
        _
    $region40: #{tpu_custom_call.1} parent=5 // pred_fallthru
      _
    %p1929 = scmp.le.s32.totalorder 2, %s11
    // Predicated region
    $region45: #{tpu_custom_call.1} parent=5 // pred_check
      %p1930 = pneg %p1929
    $region46: #{tpu_custom_call.1} parent=5 // pred_check_branch
      %1932 = sbr.rel (%p1930) target = $region48
    $region47: #{tpu_custom_call.1} parent=5 // pred_region
      %s1933 = ssub.s32 %s11, 2
      // Predicated region
      $region49: #{tpu_custom_call.1} parent=47 // pred_check
        %p1934 = pneg %p150
      $region50: #{tpu_custom_call.1} parent=47 // pred_check_branch
        %1936 = sbr.rel (%p1934) target = $region52
      $region51: #{tpu_custom_call.1} parent=47 // pred_region
        %s1937 = smul.u32 4, %s17
        %p1938 = scmp.lt.s32.totalorder %s1937, 15
        %s1939 = scalar_select %p1938, %s1937, 15
        %s1940 = smul.addr %s1939, 8
        %s1941 = scalar_lea.vmem %s5, %s1940
      $region52: #{tpu_custom_call.1} parent=47 // pred_fallthru
        _
    $region48: #{tpu_custom_call.1} parent=5 // pred_fallthru
      _
  $region6: #{tpu_custom_call.1} parent=0 // loop_footer
    %s15 = sadd.s32 1, %s11
  $region7: #{tpu_custom_call.1} parent=0 // loop_footer_branch
    %10 = sbr.rel target = $region3
  $region8: #{tpu_custom_call.1} parent=0 // loop_exit
    _

</llo_original>
